<compile_context>
chip_gen: v7x
topology: tpu7x:2x2x1
jax: 0.10.0
libtpu: 0.0.40
codegen_flags: <defaults>
</compile_context>

<pallas_src>
import functools

import jax
import jax.numpy as jnp
from jax.experimental import pallas as pl
from jax.experimental.pallas import tpu as pltpu


def _round_up(a, m):
    return ((a + m - 1) // m) * m


def gru_pooler_kernel(x_ref, w_ih_ref, w_hh_ref, b_g_ref, b_hn_ref, w_fc_ref,
                      b_fc_ref, out_ref, h_ref, gi_ref, *, t_chunk):
    """Grid = (batch_blocks [parallel], time_chunks [arbitrary/sequential]).

    x_ref   : (T_chunk, B_blk, Hp) time-major input slab for this (batch blk, time chunk)
    w_*_ref : whole-array VMEM weights (single-buffered; bf16 by default)
    b_g_ref : (1, 3Hp) folded bias  = b_ih + [b_hh_r | b_hh_z | 0]   (f32)
    b_hn_ref: (1, Hp)  n-gate hidden bias (applied inside the r multiply)
    h_ref   : (B_blk, Hp) f32 VMEM scratch carrying the hidden state across time chunks
    gi_ref  : (T_chunk, B_blk, 3Hp) f32 VMEM scratch for the hoisted input-side gates
    """
    t_idx = pl.program_id(1)
    Bb, Hp = h_ref.shape
    mm_dtype = w_hh_ref.dtype  # bf16 by default; f32 if matmul_dtype=None (no-op casts)

    @pl.when(t_idx == 0)
    def _():
        h_ref[...] = jnp.zeros_like(h_ref)

    # ---- Hoisted input-side gate matmul: ONE MXU call for the whole time chunk ------
    # Time-major layout => per-step reads below are dense (Bb, 3Hp) tiles.
    x2 = x_ref[...].reshape(t_chunk * Bb, Hp).astype(mm_dtype)
    gi = jnp.dot(x2, w_ih_ref[...], preferred_element_type=jnp.float32)
    gi_ref[...] = gi.reshape(t_chunk, Bb, 3 * Hp) + b_g_ref[...]

    w_hh = w_hh_ref[...]
    b_hn = jnp.broadcast_to(b_hn_ref[...], (Bb, Hp))   # broadcast hoisted out of loop
    h0 = h_ref[...]                                    # (Bb, Hp) f32 carry

    # ---- Recurrence: only h @ W_hh + gate math per step (fori over the gi scratch) ---
    def step(t, h):
        gi_t = gi_ref[t]                               # dense (Bb, 3Hp) load
        gh = jnp.dot(h.astype(mm_dtype), w_hh,
                     preferred_element_type=jnp.float32)
        r = jax.nn.sigmoid(gi_t[:, :Hp] + gh[:, :Hp])
        z = jax.nn.sigmoid(gi_t[:, Hp:2 * Hp] + gh[:, Hp:2 * Hp])
        n = jnp.tanh(gi_t[:, 2 * Hp:] + r * (gh[:, 2 * Hp:] + b_hn))
        return (1.0 - z) * n + z * h

    unroll = t_chunk if t_chunk <= 8 else (4 if t_chunk % 4 == 0 else 1)
    h = jax.lax.fori_loop(0, t_chunk, step, h0, unroll=unroll)
    h_ref[...] = h

    # ---- Final Linear on the last hidden state, fused into the last time chunk ------
    @pl.when(t_idx == pl.num_programs(1) - 1)
    def _():
        out = jnp.dot(h.astype(mm_dtype), w_fc_ref[...],
                      preferred_element_type=jnp.float32) + b_fc_ref[...]
        out_ref[...] = out.astype(out_ref.dtype)


def gru_pooler(hidden_states, params, *, matmul_dtype=jnp.bfloat16,
               t_chunk=None, b_block=None):
    """hidden_states: (B, T, H) batch_first, matching the PyTorch module.

    matmul_dtype: dtype of the MXU weight/activation operands (bf16 default).
                  Accumulation, hidden-state carry and gate math are always f32.
    b_block:      batch-block size. Default = whole (8-padded) batch capped at 256,
                  which is optimal on 1-TC chips (v5e/v6e). On v7x (2 TensorCores)
                  pass b_block ~= B/2 (multiple of 8) so the leading "parallel" grid
                  axis shards across both cores.
    """
    w_ih, w_hh, b_ih, b_hh, w_fc, b_fc = params
    B, T, H = hidden_states.shape
    assert w_ih.shape == (H, 3 * H) and w_fc.shape == (H, H)

    # Lane-dense hidden size (multiple of 128). For real BERT sizes this is a no-op.
    Hp = max(128, _round_up(H, 128))

    # --- fold biases: r,z hidden biases into the hoisted input-side bias -------------
    b_g = b_ih + jnp.concatenate(
        [b_hh[:, :2 * H], jnp.zeros((1, H), b_hh.dtype)], axis=1)   # (1, 3H)
    b_hn = b_hh[:, 2 * H:]                                          # (1, H)

    # --- zero-pad per-gate blocks so every gate occupies Hp lanes ---------------------
    def pad_cols(a, cols):
        return a if a.shape[1] == cols else jnp.pad(a, ((0, 0), (0, cols - a.shape[1])))

    def pad_rows(a, rows):
        return a if a.shape[0] == rows else jnp.pad(a, ((0, rows - a.shape[0]), (0, 0)))

    def pad_gate_cols(a):   # (X, 3H) -> (X, 3Hp)
        if Hp == H:
            return a
        return jnp.concatenate(
            [pad_cols(a[:, g * H:(g + 1) * H], Hp) for g in range(3)], axis=1)

    w_ih_p = pad_rows(pad_gate_cols(w_ih), Hp)
    w_hh_p = pad_rows(pad_gate_cols(w_hh), Hp)
    b_g_p = pad_gate_cols(b_g)
    b_hn_p = pad_cols(b_hn, Hp)
    w_fc_p = pad_rows(pad_cols(w_fc, Hp), Hp)
    b_fc_p = pad_cols(b_fc, Hp)

    # Weights go to the MXU dtype (bf16 default). Biases stay f32 (added post-matmul).
    if matmul_dtype is not None:
        w_ih_p = w_ih_p.astype(matmul_dtype)
        w_hh_p = w_hh_p.astype(matmul_dtype)
        w_fc_p = w_fc_p.astype(matmul_dtype)
    w_itemsize = jnp.dtype(matmul_dtype).itemsize if matmul_dtype is not None else 4

    # --- tile heuristics --------------------------------------------------------------
    Bp = _round_up(B, 8)
    if b_block is None:
        # Whole padded batch in one block (best on 1-TC v5e/v6e); cap to bound gi slab.
        b_block = min(Bp, 256)
    b_block = min(_round_up(b_block, 8), Bp)
    Bp = _round_up(Bp, b_block)                       # batch padded to multiple of b_block

    if t_chunk is None:
        gi_budget = 12 << 20                          # f32 gi slab target <= ~12 MiB
        t_cap = max(1, min(32, gi_budget // (b_block * 3 * Hp * 4)))
        # make sure the hoisted matmul M-dim (b_block*t_chunk) can reach ~256 rows
        t_cap = max(t_cap, min(T, -(-256 // b_block)))
        t_chunk = max(d for d in range(1, T + 1) if T % d == 0 and d <= t_cap)
    assert T % t_chunk == 0

    # --- pad + time-major input so per-step gi reads are dense (Bb, 3Hp) tiles --------
    x = hidden_states
    if Hp != H or Bp != B:
        x = jnp.pad(x, ((0, Bp - B), (0, 0), (0, Hp - H)))
    x = jnp.transpose(x, (1, 0, 2))                   # (T, Bp, Hp)

    grid = (Bp // b_block, T // t_chunk)
    vmem_whole = pl.BlockSpec(memory_space=pltpu.MemorySpace.VMEM)  # single-buffered

    # --- VMEM budget: compute the actual footprint, leave headroom, cap for v7x -------
    est = (
        (2 * Hp * 3 * Hp + Hp * Hp) * w_itemsize      # W_ih, W_hh, W_fc
        + (3 * Hp + 2 * Hp) * 4                       # biases (f32)
        + 2 * t_chunk * b_block * Hp * 4              # x block, double-buffered
        + t_chunk * b_block * 3 * Hp * 4              # gi scratch
        + b_block * Hp * 4                            # h scratch
        + 2 * b_block * Hp * 4                        # output block
    )
    vmem_limit = min(56 << 20, max(16 << 20, int(est * 1.4) + (4 << 20)))
    vmem_limit = max(vmem_limit, est + (2 << 20))     # never under-provision actual need

    out = pl.pallas_call(
        functools.partial(gru_pooler_kernel, t_chunk=t_chunk),
        out_shape=jax.ShapeDtypeStruct((Bp, Hp), jnp.float32),
        grid_spec=pltpu.PrefetchScalarGridSpec(
            num_scalar_prefetch=0,
            grid=grid,
            in_specs=[
                # time-major input: block = (t_chunk, b_block, Hp)
                pl.BlockSpec((t_chunk, b_block, Hp), lambda b, t: (t, b, 0)),
                vmem_whole,   # W_ih^T  (Hp, 3Hp)
                vmem_whole,   # W_hh^T  (Hp, 3Hp)
                vmem_whole,   # folded bias (1, 3Hp)
                vmem_whole,   # n-gate hidden bias (1, Hp)
                vmem_whole,   # W_fc^T  (Hp, Hp)
                vmem_whole,   # b_fc    (1, Hp)
            ],
            out_specs=pl.BlockSpec((b_block, Hp), lambda b, t: (b, 0)),
            scratch_shapes=[
                pltpu.VMEM((b_block, Hp), jnp.float32),             # hidden-state carry
                pltpu.VMEM((t_chunk, b_block, 3 * Hp), jnp.float32),  # gi slab
            ],
        ),
        compiler_params=pltpu.CompilerParams(
            dimension_semantics=("parallel", "arbitrary"),
            vmem_limit_bytes=vmem_limit),
    )(x, w_ih_p, w_hh_p, b_g_p, b_hn_p, w_fc_p, b_fc_p)

    # PyTorch does output.squeeze(1); with H > 1 that is a no-op.
    return out[:B, :H].astype(hidden_states.dtype)


def init_params(key, H):
    """PyTorch-style uniform(-1/sqrt(H), 1/sqrt(H)) init. Weights stored transposed
    ((H, 3H), (H, H)) so the kernel can do x @ W directly."""
    k = 1.0 / jnp.sqrt(H)
    keys = jax.random.split(key, 6)
    w_ih = jax.random.uniform(keys[0], (H, 3 * H), jnp.float32, -k, k)
    w_hh = jax.random.uniform(keys[1], (H, 3 * H), jnp.float32, -k, k)
    b_ih = jax.random.uniform(keys[2], (1, 3 * H), jnp.float32, -k, k)
    b_hh = jax.random.uniform(keys[3], (1, 3 * H), jnp.float32, -k, k)
    w_fc = jax.random.uniform(keys[4], (H, H), jnp.float32, -k, k)
    b_fc = jax.random.uniform(keys[5], (1, H), jnp.float32, -k, k)
    return (w_ih, w_hh, b_ih, b_hh, w_fc, b_fc)


def gru_pooler_reference(hidden_states, params):
    """Pure-JAX reference (PyTorch GRU math) for correctness checking."""
    w_ih, w_hh, b_ih, b_hh, w_fc, b_fc = params
    B, T, H = hidden_states.shape

    def step(h, x_t):
        gi = x_t @ w_ih + b_ih
        gh = h @ w_hh + b_hh
        r = jax.nn.sigmoid(gi[:, :H] + gh[:, :H])
        z = jax.nn.sigmoid(gi[:, H:2 * H] + gh[:, H:2 * H])
        n = jnp.tanh(gi[:, 2 * H:] + r * gh[:, 2 * H:])
        h_new = (1.0 - z) * n + z * h
        return h_new, None

    h0 = jnp.zeros((B, H), jnp.float32)
    h_final, _ = jax.lax.scan(step, h0, jnp.transpose(hidden_states, (1, 0, 2)))
    return h_final @ w_fc + b_fc


if __name__ == "__main__":
    # TODO(synk): bidirectional / multi-layer GRU variants (non-default config) are not
    # implemented; inter-layer dropout is a no-op for the default num_layers=1.
    B, T, H = 2, 8, 32   # batch=2, seq=8, hidden_size=32

    key = jax.random.PRNGKey(0)
    k_x, k_p = jax.random.split(key)
    hidden_states = jax.random.normal(k_x, (B, T, H), jnp.float32)
    params = init_params(k_p, H)

    ref = gru_pooler_reference(hidden_states, params)

    # f32-weight path (exactness check).
    out_f32 = jax.block_until_ready(gru_pooler(hidden_states, params, matmul_dtype=None))
    assert out_f32.shape == (B, H)
    assert jnp.allclose(out_f32, ref, rtol=1e-4, atol=1e-4)

    # Default path: bf16 weights on the MXU, f32 accumulation / carry / gate math.
    out = jax.block_until_ready(gru_pooler(hidden_states, params))
    assert out.shape == (B, H)
    assert bool(jnp.all(jnp.isfinite(out)))
    assert float(jnp.max(jnp.abs(out - ref))) < 5e-2

    print("KERNEL_OK")
</pallas_src>

<mosaic_0001>
module attributes {stable_mosaic.version = 11 : i64} {
  func.func @gru_pooler_kernel(%arg0: i32, %arg1: i32, %arg2: memref<8x8x128xf32, #tpu.memory_space<vmem>>, %arg3: memref<128x384xf32, #tpu.memory_space<vmem>>, %arg4: memref<128x384xf32, #tpu.memory_space<vmem>>, %arg5: memref<1x384xf32, #tpu.memory_space<vmem>>, %arg6: memref<1x128xf32, #tpu.memory_space<vmem>>, %arg7: memref<128x128xf32, #tpu.memory_space<vmem>>, %arg8: memref<1x128xf32, #tpu.memory_space<vmem>>, %arg9: memref<8x128xf32, #tpu.memory_space<vmem>>, %arg10: memref<8x128xf32, #tpu.memory_space<vmem>>, %arg11: memref<8x8x384xf32, #tpu.memory_space<vmem>>) attributes {dimension_semantics = [#tpu.dimension_semantics<parallel>, #tpu.dimension_semantics<arbitrary>], iteration_bounds = array<i64: 1, 1>, scalar_prefetch = 0 : i64, scratch_operands = 2 : i64, tpu.core_type = #tpu.core_type<tc>, window_params = [{transform_indices = @transform_0, window_bounds = array<i64: 8, 8, 128>}, {pipeline_mode = #tpu.pipeline_mode<synchronous>, transform_indices = @transform_1, window_bounds = array<i64: 128, 384>}, {pipeline_mode = #tpu.pipeline_mode<synchronous>, transform_indices = @transform_2, window_bounds = array<i64: 128, 384>}, {pipeline_mode = #tpu.pipeline_mode<synchronous>, transform_indices = @transform_3, window_bounds = array<i64: 1, 384>}, {pipeline_mode = #tpu.pipeline_mode<synchronous>, transform_indices = @transform_4, window_bounds = array<i64: 1, 128>}, {pipeline_mode = #tpu.pipeline_mode<synchronous>, transform_indices = @transform_5, window_bounds = array<i64: 128, 128>}, {pipeline_mode = #tpu.pipeline_mode<synchronous>, transform_indices = @transform_6, window_bounds = array<i64: 1, 128>}, {transform_indices = @transform_7, window_bounds = array<i64: 8, 128>}]} {
    %c0_i32 = arith.constant 0 : i32
    %0 = arith.cmpi eq, %arg1, %c0_i32 : i32
    %1 = arith.extui %0 : i1 to i32
    %c0_i32_0 = arith.constant 0 : i32
    %2 = arith.cmpi ne, %1, %c0_i32_0 : i32
    scf.if %2 {
      %cst_69 = arith.constant 0.000000e+00 : f32
      %270 = vector.broadcast %cst_69 : f32 to vector<8x128xf32>
      %c0_70 = arith.constant 0 : index
      %c0_71 = arith.constant 0 : index
      %271 = vector.load %arg10[%c0_70, %c0_71] : memref<8x128xf32, #tpu.memory_space<vmem>>, vector<8x128xf32>
      tpu.vector_store %arg10[%c0_70, %c0_71], %270 {strides = array<i32>} : memref<8x128xf32, #tpu.memory_space<vmem>>, vector<8x128xf32>,
    } else {
    }
    %c0 = arith.constant 0 : index
    %c0_1 = arith.constant 0 : index
    %c0_2 = arith.constant 0 : index
    %3 = vector.load %arg2[%c0, %c0_1, %c0_2] : memref<8x8x128xf32, #tpu.memory_space<vmem>>, vector<8x8x128xf32>
    %4 = vector.shape_cast %3 : vector<8x8x128xf32> to vector<64x128xf32>
    %c0_3 = arith.constant 0 : index
    %c0_4 = arith.constant 0 : index
    %5 = vector.load %arg3[%c0_3, %c0_4] : memref<128x384xf32, #tpu.memory_space<vmem>>, vector<128x384xf32>
    %cst = arith.constant dense<0.000000e+00> : vector<64x384xf32>
    %6 = tpu.matmul %4, %5, %cst {dimension_numbers = #tpu.dot_dimension_numbers<[1], [0], [0], [1], [0, 0, 1, 1], [], []>} : vector<64x128xf32>, vector<128x384xf32>, vector<64x384xf32> -> vector<64x384xf32>
    %7 = vector.shape_cast %6 : vector<64x384xf32> to vector<8x8x384xf32>
    %c0_5 = arith.constant 0 : index
    %c0_6 = arith.constant 0 : index
    %8 = vector.load %arg5[%c0_5, %c0_6] : memref<1x384xf32, #tpu.memory_space<vmem>>, vector<1x384xf32>
    %9 = vector.shape_cast %8 : vector<1x384xf32> to vector<1x1x384xf32>
    %10 = vector.broadcast %9 : vector<1x1x384xf32> to vector<8x8x384xf32>
    %11 = arith.addf %7, %10 : vector<8x8x384xf32>
    %c0_7 = arith.constant 0 : index
    %c0_8 = arith.constant 0 : index
    %c0_9 = arith.constant 0 : index
    %12 = vector.load %arg11[%c0_7, %c0_8, %c0_9] : memref<8x8x384xf32, #tpu.memory_space<vmem>>, vector<8x8x384xf32>
    tpu.vector_store %arg11[%c0_7, %c0_8, %c0_9], %11 {strides = array<i32>} : memref<8x8x384xf32, #tpu.memory_space<vmem>>, vector<8x8x384xf32>,
    %c0_10 = arith.constant 0 : index
    %c0_11 = arith.constant 0 : index
    %13 = vector.load %arg4[%c0_10, %c0_11] : memref<128x384xf32, #tpu.memory_space<vmem>>, vector<128x384xf32>
    %c0_12 = arith.constant 0 : index
    %c0_13 = arith.constant 0 : index
    %14 = vector.load %arg6[%c0_12, %c0_13] : memref<1x128xf32, #tpu.memory_space<vmem>>, vector<1x128xf32>
    %15 = vector.shape_cast %14 : vector<1x128xf32> to vector<1x128xf32>
    %16 = vector.broadcast %15 : vector<1x128xf32> to vector<8x128xf32>
    %c0_14 = arith.constant 0 : index
    %c0_15 = arith.constant 0 : index
    %17 = vector.load %arg10[%c0_14, %c0_15] : memref<8x128xf32, #tpu.memory_space<vmem>>, vector<8x128xf32>
    %c0_i32_16 = arith.constant 0 : i32
    %18 = arith.index_cast %c0_i32_16 : i32 to index
    %c0_17 = arith.constant 0 : index
    %c0_18 = arith.constant 0 : index
    %19 = vector.load %arg11[%18, %c0_17, %c0_18] : memref<8x8x384xf32, #tpu.memory_space<vmem>>, vector<1x8x384xf32>
    %20 = vector.shape_cast %19 : vector<1x8x384xf32> to vector<8x384xf32>
    %cst_19 = arith.constant dense<0.000000e+00> : vector<8x384xf32>
    %21 = tpu.matmul %17, %13, %cst_19 {dimension_numbers = #tpu.dot_dimension_numbers<[1], [0], [0], [1], [0, 0, 1, 1], [], []>} : vector<8x128xf32>, vector<128x384xf32>, vector<8x384xf32> -> vector<8x384xf32>
    %22 = vector.extract_strided_slice %20 {offsets = [0, 0], sizes = [8, 128], strides = [1, 1]} : vector<8x384xf32> to vector<8x128xf32>
    %23 = vector.extract_strided_slice %21 {offsets = [0, 0], sizes = [8, 128], strides = [1, 1]} : vector<8x384xf32> to vector<8x128xf32>
    %24 = arith.addf %22, %23 : vector<8x128xf32>
    %25 = arith.negf %24 : vector<8x128xf32>
    %26 = math.exp %25 : vector<8x128xf32>
    %cst_20 = arith.constant 1.000000e+00 : f32
    %27 = vector.broadcast %cst_20 : f32 to vector<8x128xf32>
    %28 = arith.addf %27, %26 : vector<8x128xf32>
    %29 = arith.divf %27, %28 : vector<8x128xf32>
    %30 = vector.extract_strided_slice %20 {offsets = [0, 128], sizes = [8, 128], strides = [1, 1]} : vector<8x384xf32> to vector<8x128xf32>
    %31 = vector.extract_strided_slice %21 {offsets = [0, 128], sizes = [8, 128], strides = [1, 1]} : vector<8x384xf32> to vector<8x128xf32>
    %32 = arith.addf %30, %31 : vector<8x128xf32>
    %33 = arith.negf %32 : vector<8x128xf32>
    %34 = math.exp %33 : vector<8x128xf32>
    %cst_21 = arith.constant 1.000000e+00 : f32
    %35 = vector.broadcast %cst_21 : f32 to vector<8x128xf32>
    %36 = arith.addf %35, %34 : vector<8x128xf32>
    %37 = arith.divf %35, %36 : vector<8x128xf32>
    %38 = vector.extract_strided_slice %20 {offsets = [0, 256], sizes = [8, 128], strides = [1, 1]} : vector<8x384xf32> to vector<8x128xf32>
    %39 = vector.extract_strided_slice %21 {offsets = [0, 256], sizes = [8, 128], strides = [1, 1]} : vector<8x384xf32> to vector<8x128xf32>
    %40 = arith.addf %39, %16 : vector<8x128xf32>
    %41 = arith.mulf %29, %40 : vector<8x128xf32>
    %42 = arith.addf %38, %41 : vector<8x128xf32>
    %43 = math.tanh %42 : vector<8x128xf32>
    %cst_22 = arith.constant 1.000000e+00 : f32
    %44 = vector.broadcast %cst_22 : f32 to vector<8x128xf32>
    %45 = arith.subf %44, %37 : vector<8x128xf32>
    %46 = arith.mulf %45, %43 : vector<8x128xf32>
    %47 = arith.mulf %37, %17 : vector<8x128xf32>
    %48 = arith.addf %46, %47 : vector<8x128xf32>
    %c1_i32 = arith.constant 1 : i32
    %49 = arith.index_cast %c1_i32 : i32 to index
    %c0_23 = arith.constant 0 : index
    %c0_24 = arith.constant 0 : index
    %50 = vector.load %arg11[%49, %c0_23, %c0_24] : memref<8x8x384xf32, #tpu.memory_space<vmem>>, vector<1x8x384xf32>
    %51 = vector.shape_cast %50 : vector<1x8x384xf32> to vector<8x384xf32>
    %cst_25 = arith.constant dense<0.000000e+00> : vector<8x384xf32>
    %52 = tpu.matmul %48, %13, %cst_25 {dimension_numbers = #tpu.dot_dimension_numbers<[1], [0], [0], [1], [0, 0, 1, 1], [], []>} : vector<8x128xf32>, vector<128x384xf32>, vector<8x384xf32> -> vector<8x384xf32>
    %53 = vector.extract_strided_slice %51 {offsets = [0, 0], sizes = [8, 128], strides = [1, 1]} : vector<8x384xf32> to vector<8x128xf32>
    %54 = vector.extract_strided_slice %52 {offsets = [0, 0], sizes = [8, 128], strides = [1, 1]} : vector<8x384xf32> to vector<8x128xf32>
    %55 = arith.addf %53, %54 : vector<8x128xf32>
    %56 = arith.negf %55 : vector<8x128xf32>
    %57 = math.exp %56 : vector<8x128xf32>
    %cst_26 = arith.constant 1.000000e+00 : f32
    %58 = vector.broadcast %cst_26 : f32 to vector<8x128xf32>
    %59 = arith.addf %58, %57 : vector<8x128xf32>
    %60 = arith.divf %58, %59 : vector<8x128xf32>
    %61 = vector.extract_strided_slice %51 {offsets = [0, 128], sizes = [8, 128], strides = [1, 1]} : vector<8x384xf32> to vector<8x128xf32>
    %62 = vector.extract_strided_slice %52 {offsets = [0, 128], sizes = [8, 128], strides = [1, 1]} : vector<8x384xf32> to vector<8x128xf32>
    %63 = arith.addf %61, %62 : vector<8x128xf32>
    %64 = arith.negf %63 : vector<8x128xf32>
    %65 = math.exp %64 : vector<8x128xf32>
    %cst_27 = arith.constant 1.000000e+00 : f32
    %66 = vector.broadcast %cst_27 : f32 to vector<8x128xf32>
    %67 = arith.addf %66, %65 : vector<8x128xf32>
    %68 = arith.divf %66, %67 : vector<8x128xf32>
    %69 = vector.extract_strided_slice %51 {offsets = [0, 256], sizes = [8, 128], strides = [1, 1]} : vector<8x384xf32> to vector<8x128xf32>
    %70 = vector.extract_strided_slice %52 {offsets = [0, 256], sizes = [8, 128], strides = [1, 1]} : vector<8x384xf32> to vector<8x128xf32>
    %71 = arith.addf %70, %16 : vector<8x128xf32>
    %72 = arith.mulf %60, %71 : vector<8x128xf32>
    %73 = arith.addf %69, %72 : vector<8x128xf32>
    %74 = math.tanh %73 : vector<8x128xf32>
    %cst_28 = arith.constant 1.000000e+00 : f32
    %75 = vector.broadcast %cst_28 : f32 to vector<8x128xf32>
    %76 = arith.subf %75, %68 : vector<8x128xf32>
    %77 = arith.mulf %76, %74 : vector<8x128xf32>
    %78 = arith.mulf %68, %48 : vector<8x128xf32>
    %79 = arith.addf %77, %78 : vector<8x128xf32>
    %c2_i32 = arith.constant 2 : i32
    %80 = arith.index_cast %c2_i32 : i32 to index
    %c0_29 = arith.constant 0 : index
    %c0_30 = arith.constant 0 : index
    %81 = vector.load %arg11[%80, %c0_29, %c0_30] : memref<8x8x384xf32, #tpu.memory_space<vmem>>, vector<1x8x384xf32>
    %82 = vector.shape_cast %81 : vector<1x8x384xf32> to vector<8x384xf32>
    %cst_31 = arith.constant dense<0.000000e+00> : vector<8x384xf32>
    %83 = tpu.matmul %79, %13, %cst_31 {dimension_numbers = #tpu.dot_dimension_numbers<[1], [0], [0], [1], [0, 0, 1, 1], [], []>} : vector<8x128xf32>, vector<128x384xf32>, vector<8x384xf32> -> vector<8x384xf32>
    %84 = vector.extract_strided_slice %82 {offsets = [0, 0], sizes = [8, 128], strides = [1, 1]} : vector<8x384xf32> to vector<8x128xf32>
    %85 = vector.extract_strided_slice %83 {offsets = [0, 0], sizes = [8, 128], strides = [1, 1]} : vector<8x384xf32> to vector<8x128xf32>
    %86 = arith.addf %84, %85 : vector<8x128xf32>
    %87 = arith.negf %86 : vector<8x128xf32>
    %88 = math.exp %87 : vector<8x128xf32>
    %cst_32 = arith.constant 1.000000e+00 : f32
    %89 = vector.broadcast %cst_32 : f32 to vector<8x128xf32>
    %90 = arith.addf %89, %88 : vector<8x128xf32>
    %91 = arith.divf %89, %90 : vector<8x128xf32>
    %92 = vector.extract_strided_slice %82 {offsets = [0, 128], sizes = [8, 128], strides = [1, 1]} : vector<8x384xf32> to vector<8x128xf32>
    %93 = vector.extract_strided_slice %83 {offsets = [0, 128], sizes = [8, 128], strides = [1, 1]} : vector<8x384xf32> to vector<8x128xf32>
    %94 = arith.addf %92, %93 : vector<8x128xf32>
    %95 = arith.negf %94 : vector<8x128xf32>
    %96 = math.exp %95 : vector<8x128xf32>
    %cst_33 = arith.constant 1.000000e+00 : f32
    %97 = vector.broadcast %cst_33 : f32 to vector<8x128xf32>
    %98 = arith.addf %97, %96 : vector<8x128xf32>
    %99 = arith.divf %97, %98 : vector<8x128xf32>
    %100 = vector.extract_strided_slice %82 {offsets = [0, 256], sizes = [8, 128], strides = [1, 1]} : vector<8x384xf32> to vector<8x128xf32>
    %101 = vector.extract_strided_slice %83 {offsets = [0, 256], sizes = [8, 128], strides = [1, 1]} : vector<8x384xf32> to vector<8x128xf32>
    %102 = arith.addf %101, %16 : vector<8x128xf32>
    %103 = arith.mulf %91, %102 : vector<8x128xf32>
    %104 = arith.addf %100, %103 : vector<8x128xf32>
    %105 = math.tanh %104 : vector<8x128xf32>
    %cst_34 = arith.constant 1.000000e+00 : f32
    %106 = vector.broadcast %cst_34 : f32 to vector<8x128xf32>
    %107 = arith.subf %106, %99 : vector<8x128xf32>
    %108 = arith.mulf %107, %105 : vector<8x128xf32>
    %109 = arith.mulf %99, %79 : vector<8x128xf32>
    %110 = arith.addf %108, %109 : vector<8x128xf32>
    %c3_i32 = arith.constant 3 : i32
    %111 = arith.index_cast %c3_i32 : i32 to index
    %c0_35 = arith.constant 0 : index
    %c0_36 = arith.constant 0 : index
    %112 = vector.load %arg11[%111, %c0_35, %c0_36] : memref<8x8x384xf32, #tpu.memory_space<vmem>>, vector<1x8x384xf32>
    %113 = vector.shape_cast %112 : vector<1x8x384xf32> to vector<8x384xf32>
    %cst_37 = arith.constant dense<0.000000e+00> : vector<8x384xf32>
    %114 = tpu.matmul %110, %13, %cst_37 {dimension_numbers = #tpu.dot_dimension_numbers<[1], [0], [0], [1], [0, 0, 1, 1], [], []>} : vector<8x128xf32>, vector<128x384xf32>, vector<8x384xf32> -> vector<8x384xf32>
    %115 = vector.extract_strided_slice %113 {offsets = [0, 0], sizes = [8, 128], strides = [1, 1]} : vector<8x384xf32> to vector<8x128xf32>
    %116 = vector.extract_strided_slice %114 {offsets = [0, 0], sizes = [8, 128], strides = [1, 1]} : vector<8x384xf32> to vector<8x128xf32>
    %117 = arith.addf %115, %116 : vector<8x128xf32>
    %118 = arith.negf %117 : vector<8x128xf32>
    %119 = math.exp %118 : vector<8x128xf32>
    %cst_38 = arith.constant 1.000000e+00 : f32
    %120 = vector.broadcast %cst_38 : f32 to vector<8x128xf32>
    %121 = arith.addf %120, %119 : vector<8x128xf32>
    %122 = arith.divf %120, %121 : vector<8x128xf32>
    %123 = vector.extract_strided_slice %113 {offsets = [0, 128], sizes = [8, 128], strides = [1, 1]} : vector<8x384xf32> to vector<8x128xf32>
    %124 = vector.extract_strided_slice %114 {offsets = [0, 128], sizes = [8, 128], strides = [1, 1]} : vector<8x384xf32> to vector<8x128xf32>
    %125 = arith.addf %123, %124 : vector<8x128xf32>
    %126 = arith.negf %125 : vector<8x128xf32>
    %127 = math.exp %126 : vector<8x128xf32>
    %cst_39 = arith.constant 1.000000e+00 : f32
    %128 = vector.broadcast %cst_39 : f32 to vector<8x128xf32>
    %129 = arith.addf %128, %127 : vector<8x128xf32>
    %130 = arith.divf %128, %129 : vector<8x128xf32>
    %131 = vector.extract_strided_slice %113 {offsets = [0, 256], sizes = [8, 128], strides = [1, 1]} : vector<8x384xf32> to vector<8x128xf32>
    %132 = vector.extract_strided_slice %114 {offsets = [0, 256], sizes = [8, 128], strides = [1, 1]} : vector<8x384xf32> to vector<8x128xf32>
    %133 = arith.addf %132, %16 : vector<8x128xf32>
    %134 = arith.mulf %122, %133 : vector<8x128xf32>
    %135 = arith.addf %131, %134 : vector<8x128xf32>
    %136 = math.tanh %135 : vector<8x128xf32>
    %cst_40 = arith.constant 1.000000e+00 : f32
    %137 = vector.broadcast %cst_40 : f32 to vector<8x128xf32>
    %138 = arith.subf %137, %130 : vector<8x128xf32>
    %139 = arith.mulf %138, %136 : vector<8x128xf32>
    %140 = arith.mulf %130, %110 : vector<8x128xf32>
    %141 = arith.addf %139, %140 : vector<8x128xf32>
    %c4_i32 = arith.constant 4 : i32
    %142 = arith.index_cast %c4_i32 : i32 to index
    %c0_41 = arith.constant 0 : index
    %c0_42 = arith.constant 0 : index
    %143 = vector.load %arg11[%142, %c0_41, %c0_42] : memref<8x8x384xf32, #tpu.memory_space<vmem>>, vector<1x8x384xf32>
    %144 = vector.shape_cast %143 : vector<1x8x384xf32> to vector<8x384xf32>
    %cst_43 = arith.constant dense<0.000000e+00> : vector<8x384xf32>
    %145 = tpu.matmul %141, %13, %cst_43 {dimension_numbers = #tpu.dot_dimension_numbers<[1], [0], [0], [1], [0, 0, 1, 1], [], []>} : vector<8x128xf32>, vector<128x384xf32>, vector<8x384xf32> -> vector<8x384xf32>
    %146 = vector.extract_strided_slice %144 {offsets = [0, 0], sizes = [8, 128], strides = [1, 1]} : vector<8x384xf32> to vector<8x128xf32>
    %147 = vector.extract_strided_slice %145 {offsets = [0, 0], sizes = [8, 128], strides = [1, 1]} : vector<8x384xf32> to vector<8x128xf32>
    %148 = arith.addf %146, %147 : vector<8x128xf32>
    %149 = arith.negf %148 : vector<8x128xf32>
    %150 = math.exp %149 : vector<8x128xf32>
    %cst_44 = arith.constant 1.000000e+00 : f32
    %151 = vector.broadcast %cst_44 : f32 to vector<8x128xf32>
    %152 = arith.addf %151, %150 : vector<8x128xf32>
    %153 = arith.divf %151, %152 : vector<8x128xf32>
    %154 = vector.extract_strided_slice %144 {offsets = [0, 128], sizes = [8, 128], strides = [1, 1]} : vector<8x384xf32> to vector<8x128xf32>
    %155 = vector.extract_strided_slice %145 {offsets = [0, 128], sizes = [8, 128], strides = [1, 1]} : vector<8x384xf32> to vector<8x128xf32>
    %156 = arith.addf %154, %155 : vector<8x128xf32>
    %157 = arith.negf %156 : vector<8x128xf32>
    %158 = math.exp %157 : vector<8x128xf32>
    %cst_45 = arith.constant 1.000000e+00 : f32
    %159 = vector.broadcast %cst_45 : f32 to vector<8x128xf32>
    %160 = arith.addf %159, %158 : vector<8x128xf32>
    %161 = arith.divf %159, %160 : vector<8x128xf32>
    %162 = vector.extract_strided_slice %144 {offsets = [0, 256], sizes = [8, 128], strides = [1, 1]} : vector<8x384xf32> to vector<8x128xf32>
    %163 = vector.extract_strided_slice %145 {offsets = [0, 256], sizes = [8, 128], strides = [1, 1]} : vector<8x384xf32> to vector<8x128xf32>
    %164 = arith.addf %163, %16 : vector<8x128xf32>
    %165 = arith.mulf %153, %164 : vector<8x128xf32>
    %166 = arith.addf %162, %165 : vector<8x128xf32>
    %167 = math.tanh %166 : vector<8x128xf32>
    %cst_46 = arith.constant 1.000000e+00 : f32
    %168 = vector.broadcast %cst_46 : f32 to vector<8x128xf32>
    %169 = arith.subf %168, %161 : vector<8x128xf32>
    %170 = arith.mulf %169, %167 : vector<8x128xf32>
    %171 = arith.mulf %161, %141 : vector<8x128xf32>
    %172 = arith.addf %170, %171 : vector<8x128xf32>
    %c5_i32 = arith.constant 5 : i32
    %173 = arith.index_cast %c5_i32 : i32 to index
    %c0_47 = arith.constant 0 : index
    %c0_48 = arith.constant 0 : index
    %174 = vector.load %arg11[%173, %c0_47, %c0_48] : memref<8x8x384xf32, #tpu.memory_space<vmem>>, vector<1x8x384xf32>
    %175 = vector.shape_cast %174 : vector<1x8x384xf32> to vector<8x384xf32>
    %cst_49 = arith.constant dense<0.000000e+00> : vector<8x384xf32>
    %176 = tpu.matmul %172, %13, %cst_49 {dimension_numbers = #tpu.dot_dimension_numbers<[1], [0], [0], [1], [0, 0, 1, 1], [], []>} : vector<8x128xf32>, vector<128x384xf32>, vector<8x384xf32> -> vector<8x384xf32>
    %177 = vector.extract_strided_slice %175 {offsets = [0, 0], sizes = [8, 128], strides = [1, 1]} : vector<8x384xf32> to vector<8x128xf32>
    %178 = vector.extract_strided_slice %176 {offsets = [0, 0], sizes = [8, 128], strides = [1, 1]} : vector<8x384xf32> to vector<8x128xf32>
    %179 = arith.addf %177, %178 : vector<8x128xf32>
    %180 = arith.negf %179 : vector<8x128xf32>
    %181 = math.exp %180 : vector<8x128xf32>
    %cst_50 = arith.constant 1.000000e+00 : f32
    %182 = vector.broadcast %cst_50 : f32 to vector<8x128xf32>
    %183 = arith.addf %182, %181 : vector<8x128xf32>
    %184 = arith.divf %182, %183 : vector<8x128xf32>
    %185 = vector.extract_strided_slice %175 {offsets = [0, 128], sizes = [8, 128], strides = [1, 1]} : vector<8x384xf32> to vector<8x128xf32>
    %186 = vector.extract_strided_slice %176 {offsets = [0, 128], sizes = [8, 128], strides = [1, 1]} : vector<8x384xf32> to vector<8x128xf32>
    %187 = arith.addf %185, %186 : vector<8x128xf32>
    %188 = arith.negf %187 : vector<8x128xf32>
    %189 = math.exp %188 : vector<8x128xf32>
    %cst_51 = arith.constant 1.000000e+00 : f32
    %190 = vector.broadcast %cst_51 : f32 to vector<8x128xf32>
    %191 = arith.addf %190, %189 : vector<8x128xf32>
    %192 = arith.divf %190, %191 : vector<8x128xf32>
    %193 = vector.extract_strided_slice %175 {offsets = [0, 256], sizes = [8, 128], strides = [1, 1]} : vector<8x384xf32> to vector<8x128xf32>
    %194 = vector.extract_strided_slice %176 {offsets = [0, 256], sizes = [8, 128], strides = [1, 1]} : vector<8x384xf32> to vector<8x128xf32>
    %195 = arith.addf %194, %16 : vector<8x128xf32>
    %196 = arith.mulf %184, %195 : vector<8x128xf32>
    %197 = arith.addf %193, %196 : vector<8x128xf32>
    %198 = math.tanh %197 : vector<8x128xf32>
    %cst_52 = arith.constant 1.000000e+00 : f32
    %199 = vector.broadcast %cst_52 : f32 to vector<8x128xf32>
    %200 = arith.subf %199, %192 : vector<8x128xf32>
    %201 = arith.mulf %200, %198 : vector<8x128xf32>
    %202 = arith.mulf %192, %172 : vector<8x128xf32>
    %203 = arith.addf %201, %202 : vector<8x128xf32>
    %c6_i32 = arith.constant 6 : i32
    %204 = arith.index_cast %c6_i32 : i32 to index
    %c0_53 = arith.constant 0 : index
    %c0_54 = arith.constant 0 : index
    %205 = vector.load %arg11[%204, %c0_53, %c0_54] : memref<8x8x384xf32, #tpu.memory_space<vmem>>, vector<1x8x384xf32>
    %206 = vector.shape_cast %205 : vector<1x8x384xf32> to vector<8x384xf32>
    %cst_55 = arith.constant dense<0.000000e+00> : vector<8x384xf32>
    %207 = tpu.matmul %203, %13, %cst_55 {dimension_numbers = #tpu.dot_dimension_numbers<[1], [0], [0], [1], [0, 0, 1, 1], [], []>} : vector<8x128xf32>, vector<128x384xf32>, vector<8x384xf32> -> vector<8x384xf32>
    %208 = vector.extract_strided_slice %206 {offsets = [0, 0], sizes = [8, 128], strides = [1, 1]} : vector<8x384xf32> to vector<8x128xf32>
    %209 = vector.extract_strided_slice %207 {offsets = [0, 0], sizes = [8, 128], strides = [1, 1]} : vector<8x384xf32> to vector<8x128xf32>
    %210 = arith.addf %208, %209 : vector<8x128xf32>
    %211 = arith.negf %210 : vector<8x128xf32>
    %212 = math.exp %211 : vector<8x128xf32>
    %cst_56 = arith.constant 1.000000e+00 : f32
    %213 = vector.broadcast %cst_56 : f32 to vector<8x128xf32>
    %214 = arith.addf %213, %212 : vector<8x128xf32>
    %215 = arith.divf %213, %214 : vector<8x128xf32>
    %216 = vector.extract_strided_slice %206 {offsets = [0, 128], sizes = [8, 128], strides = [1, 1]} : vector<8x384xf32> to vector<8x128xf32>
    %217 = vector.extract_strided_slice %207 {offsets = [0, 128], sizes = [8, 128], strides = [1, 1]} : vector<8x384xf32> to vector<8x128xf32>
    %218 = arith.addf %216, %217 : vector<8x128xf32>
    %219 = arith.negf %218 : vector<8x128xf32>
    %220 = math.exp %219 : vector<8x128xf32>
    %cst_57 = arith.constant 1.000000e+00 : f32
    %221 = vector.broadcast %cst_57 : f32 to vector<8x128xf32>
    %222 = arith.addf %221, %220 : vector<8x128xf32>
    %223 = arith.divf %221, %222 : vector<8x128xf32>
    %224 = vector.extract_strided_slice %206 {offsets = [0, 256], sizes = [8, 128], strides = [1, 1]} : vector<8x384xf32> to vector<8x128xf32>
    %225 = vector.extract_strided_slice %207 {offsets = [0, 256], sizes = [8, 128], strides = [1, 1]} : vector<8x384xf32> to vector<8x128xf32>
    %226 = arith.addf %225, %16 : vector<8x128xf32>
    %227 = arith.mulf %215, %226 : vector<8x128xf32>
    %228 = arith.addf %224, %227 : vector<8x128xf32>
    %229 = math.tanh %228 : vector<8x128xf32>
    %cst_58 = arith.constant 1.000000e+00 : f32
    %230 = vector.broadcast %cst_58 : f32 to vector<8x128xf32>
    %231 = arith.subf %230, %223 : vector<8x128xf32>
    %232 = arith.mulf %231, %229 : vector<8x128xf32>
    %233 = arith.mulf %223, %203 : vector<8x128xf32>
    %234 = arith.addf %232, %233 : vector<8x128xf32>
    %c7_i32 = arith.constant 7 : i32
    %235 = arith.index_cast %c7_i32 : i32 to index
    %c0_59 = arith.constant 0 : index
    %c0_60 = arith.constant 0 : index
    %236 = vector.load %arg11[%235, %c0_59, %c0_60] : memref<8x8x384xf32, #tpu.memory_space<vmem>>, vector<1x8x384xf32>
    %237 = vector.shape_cast %236 : vector<1x8x384xf32> to vector<8x384xf32>
    %cst_61 = arith.constant dense<0.000000e+00> : vector<8x384xf32>
    %238 = tpu.matmul %234, %13, %cst_61 {dimension_numbers = #tpu.dot_dimension_numbers<[1], [0], [0], [1], [0, 0, 1, 1], [], []>} : vector<8x128xf32>, vector<128x384xf32>, vector<8x384xf32> -> vector<8x384xf32>
    %239 = vector.extract_strided_slice %237 {offsets = [0, 0], sizes = [8, 128], strides = [1, 1]} : vector<8x384xf32> to vector<8x128xf32>
    %240 = vector.extract_strided_slice %238 {offsets = [0, 0], sizes = [8, 128], strides = [1, 1]} : vector<8x384xf32> to vector<8x128xf32>
    %241 = arith.addf %239, %240 : vector<8x128xf32>
    %242 = arith.negf %241 : vector<8x128xf32>
    %243 = math.exp %242 : vector<8x128xf32>
    %cst_62 = arith.constant 1.000000e+00 : f32
    %244 = vector.broadcast %cst_62 : f32 to vector<8x128xf32>
    %245 = arith.addf %244, %243 : vector<8x128xf32>
    %246 = arith.divf %244, %245 : vector<8x128xf32>
    %247 = vector.extract_strided_slice %237 {offsets = [0, 128], sizes = [8, 128], strides = [1, 1]} : vector<8x384xf32> to vector<8x128xf32>
    %248 = vector.extract_strided_slice %238 {offsets = [0, 128], sizes = [8, 128], strides = [1, 1]} : vector<8x384xf32> to vector<8x128xf32>
    %249 = arith.addf %247, %248 : vector<8x128xf32>
    %250 = arith.negf %249 : vector<8x128xf32>
    %251 = math.exp %250 : vector<8x128xf32>
    %cst_63 = arith.constant 1.000000e+00 : f32
    %252 = vector.broadcast %cst_63 : f32 to vector<8x128xf32>
    %253 = arith.addf %252, %251 : vector<8x128xf32>
    %254 = arith.divf %252, %253 : vector<8x128xf32>
    %255 = vector.extract_strided_slice %237 {offsets = [0, 256], sizes = [8, 128], strides = [1, 1]} : vector<8x384xf32> to vector<8x128xf32>
    %256 = vector.extract_strided_slice %238 {offsets = [0, 256], sizes = [8, 128], strides = [1, 1]} : vector<8x384xf32> to vector<8x128xf32>
    %257 = arith.addf %256, %16 : vector<8x128xf32>
    %258 = arith.mulf %246, %257 : vector<8x128xf32>
    %259 = arith.addf %255, %258 : vector<8x128xf32>
    %260 = math.tanh %259 : vector<8x128xf32>
    %cst_64 = arith.constant 1.000000e+00 : f32
    %261 = vector.broadcast %cst_64 : f32 to vector<8x128xf32>
    %262 = arith.subf %261, %254 : vector<8x128xf32>
    %263 = arith.mulf %262, %260 : vector<8x128xf32>
    %264 = arith.mulf %254, %234 : vector<8x128xf32>
    %265 = arith.addf %263, %264 : vector<8x128xf32>
    %c8_i32 = arith.constant 8 : i32
    %c0_65 = arith.constant 0 : index
    %c0_66 = arith.constant 0 : index
    %266 = vector.load %arg10[%c0_65, %c0_66] : memref<8x128xf32, #tpu.memory_space<vmem>>, vector<8x128xf32>
    tpu.vector_store %arg10[%c0_65, %c0_66], %265 {strides = array<i32>} : memref<8x128xf32, #tpu.memory_space<vmem>>, vector<8x128xf32>,
    %c0_i32_67 = arith.constant 0 : i32
    %267 = arith.cmpi eq, %arg1, %c0_i32_67 : i32
    %268 = arith.extui %267 : i1 to i32
    %c0_i32_68 = arith.constant 0 : i32
    %269 = arith.cmpi ne, %268, %c0_i32_68 : i32
    scf.if %269 {
      %c0_69 = arith.constant 0 : index
      %c0_70 = arith.constant 0 : index
      %270 = vector.load %arg7[%c0_69, %c0_70] : memref<128x128xf32, #tpu.memory_space<vmem>>, vector<128x128xf32>
      %cst_71 = arith.constant dense<0.000000e+00> : vector<8x128xf32>
      %271 = tpu.matmul %265, %270, %cst_71 {dimension_numbers = #tpu.dot_dimension_numbers<[1], [0], [0], [1], [0, 0, 1, 1], [], []>} : vector<8x128xf32>, vector<128x128xf32>, vector<8x128xf32> -> vector<8x128xf32>
      %c0_72 = arith.constant 0 : index
      %c0_73 = arith.constant 0 : index
      %272 = vector.load %arg8[%c0_72, %c0_73] : memref<1x128xf32, #tpu.memory_space<vmem>>, vector<1x128xf32>
      %273 = vector.broadcast %272 : vector<1x128xf32> to vector<8x128xf32>
      %274 = arith.addf %271, %273 : vector<8x128xf32>
      %c0_74 = arith.constant 0 : index
      %c0_75 = arith.constant 0 : index
      %275 = vector.load %arg9[%c0_74, %c0_75] : memref<8x128xf32, #tpu.memory_space<vmem>>, vector<8x128xf32>
      tpu.vector_store %arg9[%c0_74, %c0_75], %274 {strides = array<i32>} : memref<8x128xf32, #tpu.memory_space<vmem>>, vector<8x128xf32>,
    } else {
    }
    return
  }
  func.func @transform_0(%arg0: i32, %arg1: i32) -> (i32, i32, i32) {
    %c0_i32 = arith.constant 0 : i32
    %c0_i32_0 = arith.constant 0 : i32
    return %arg1, %arg0, %c0_i32 : i32, i32, i32
  }
  func.func @transform_1(%arg0: i32, %arg1: i32) -> (i32, i32) {
    %c0_i32 = arith.constant 0 : i32
    %c0_i32_0 = arith.constant 0 : i32
    %c0_i32_1 = arith.constant 0 : i32
    return %c0_i32, %c0_i32_0 : i32, i32
  }
  func.func @transform_2(%arg0: i32, %arg1: i32) -> (i32, i32) {
    %c0_i32 = arith.constant 0 : i32
    %c0_i32_0 = arith.constant 0 : i32
    %c0_i32_1 = arith.constant 0 : i32
    return %c0_i32, %c0_i32_0 : i32, i32
  }
  func.func @transform_3(%arg0: i32, %arg1: i32) -> (i32, i32) {
    %c0_i32 = arith.constant 0 : i32
    %c0_i32_0 = arith.constant 0 : i32
    %c0_i32_1 = arith.constant 0 : i32
    return %c0_i32, %c0_i32_0 : i32, i32
  }
  func.func @transform_4(%arg0: i32, %arg1: i32) -> (i32, i32) {
    %c0_i32 = arith.constant 0 : i32
    %c0_i32_0 = arith.constant 0 : i32
    %c0_i32_1 = arith.constant 0 : i32
    return %c0_i32, %c0_i32_0 : i32, i32
  }
  func.func @transform_5(%arg0: i32, %arg1: i32) -> (i32, i32) {
    %c0_i32 = arith.constant 0 : i32
    %c0_i32_0 = arith.constant 0 : i32
    %c0_i32_1 = arith.constant 0 : i32
    return %c0_i32, %c0_i32_0 : i32, i32
  }
  func.func @transform_6(%arg0: i32, %arg1: i32) -> (i32, i32) {
    %c0_i32 = arith.constant 0 : i32
    %c0_i32_0 = arith.constant 0 : i32
    %c0_i32_1 = arith.constant 0 : i32
    return %c0_i32, %c0_i32_0 : i32, i32
  }
  func.func @transform_7(%arg0: i32, %arg1: i32) -> (i32, i32) {
    %c0_i32 = arith.constant 0 : i32
    %c0_i32_0 = arith.constant 0 : i32
    return %arg0, %c0_i32 : i32, i32
  }
}

</mosaic_0001>

<llo_original>
// kernel: tpu_custom_call.1
$region0: #{tpu_custom_call.1}
  #allocation0 [shape = 'u32[]', space=smem, size = 0x4, offset = 0x4, fixed_abs, tag = 'smem constant byte address 0x4 - core index']
  #allocation1 [shape = 'u32[144,128]{1,0:T(1,128)}', space=vmem, size = 0x12000, scoped, tag = 'internal scratch']
  #allocation2 [shape = 'f32[8,128]{1,0:T(8,128)}', space=vmem, size = 0x1000, scoped, tag = 'scratch operand']
  #allocation3 [shape = 'f32[8,8,384]{2,1,0:T(8,128)}', space=vmem, size = 0x18000, scoped, tag = 'scratch operand']
  %s0 = inlined_call_operand.hbm [shape: f32[8,8,128], index: 0, kind: input, shape index: {}]
  %s1 = inlined_call_operand.hbm [shape: f32[128,384], index: 1, kind: input, shape index: {}]
  %s2 = inlined_call_operand.hbm [shape: f32[128,384], index: 2, kind: input, shape index: {}]
  %s3 = inlined_call_operand.vmem [shape: f32[1,384], index: 3, kind: input, shape index: {}]
  %s4 = inlined_call_operand.vmem [shape: f32[1,128], index: 4, kind: input, shape index: {}]
  %s5 = inlined_call_operand.hbm [shape: f32[128,128], index: 5, kind: input, shape index: {}]
  %s6 = inlined_call_operand.vmem [shape: f32[1,128], index: 6, kind: input, shape index: {}]
  %s7 = inlined_call_operand.hbm [shape: f32[8,128], index: 7, kind: output, shape index: {}]
  %s8 = sld [smem:[#allocation0]]
  $region62: #{tpu_custom_call.1} parent=0
    _
  %s10 = ssub.s32 1, %s8
  %s11 = scalar_select 0, %s10, %s8
  $region1: #{tpu_custom_call.1} parent=0
    #allocation4 [shape = 'u8[32768]{0}', space=vmem, size = 0x8000, scoped, tag = 'input window, operand 0, single buffered']
    #allocation5 [shape = 's32[1]{0}', space=sflag, size = 0x4, scoped, tag = 'scoped memory for tpu_custom_call.1']
    #allocation6 [shape = 's32[1]{0}', space=sflag, size = 0x4, scoped, tag = 'scoped memory for tpu_custom_call.1']
    #allocation7 [shape = 'u8[196608]{0}', space=vmem, size = 0x30000, scoped, tag = 'input window, operand 1, single buffered']
    #allocation8 [shape = 's32[1]{0}', space=sflag, size = 0x4, scoped, tag = 'scoped memory for tpu_custom_call.1']
    #allocation9 [shape = 'u8[196608]{0}', space=vmem, size = 0x30000, scoped, tag = 'input window, operand 2, single buffered']
    #allocation10 [shape = 'u8[65536]{0}', space=vmem, size = 0x10000, scoped, tag = 'input window, operand 5, single buffered']
    #allocation11 [shape = 's32[1]{0}', space=sflag, size = 0x4, scoped, tag = 'scoped memory for tpu_custom_call.1']
    #allocation12 [shape = 'u8[4096]{0}', space=vmem, size = 0x1000, scoped, tag = 'output window, operand 0, single buffered']
    %12 = vsyncpa [#allocation5], 0
    %13 = vsyncpa [#allocation8], 0
    %14 = vsyncpa [#allocation11], 0
    %15 = vsyncpa [#allocation6], 0
    // Predicated region
    $region2: #{tpu_custom_call.1} parent=1 // pred_check
      _
    $region3: #{tpu_custom_call.1} parent=1 // pred_check_branch
      %17 = sbr.rel (0) target = $region5
    $region4: #{tpu_custom_call.1} parent=1 // pred_region
      %s19 = ssub.s32 1024, 1024
      %20 = vsyncadd [#allocation5], %s19
      %s21 = sshll.u32 [#allocation4], 4
      %s22 = int_to_ptr.vmem [resolvable:$true] %s21
      %27 = dma.hbm_to_vmem [thread:$0]  %s0, 1024, %s22, [#allocation5], 128, 128, 8
    $region5: #{tpu_custom_call.1} parent=1 // pred_fallthru
      _
    // Predicated region
    $region6: #{tpu_custom_call.1} parent=1 // pred_check
      _
    $region7: #{tpu_custom_call.1} parent=1 // pred_check_branch
      %29 = sbr.rel (0) target = $region9
    $region8: #{tpu_custom_call.1} parent=1 // pred_region
      %s31 = ssub.s32 6144, 6144
      %32 = vsyncadd [#allocation8], %s31
      %s33 = sshll.u32 [#allocation7], 4
      %s34 = int_to_ptr.vmem [resolvable:$true] %s33
      %39 = dma.hbm_to_vmem [thread:$0]  %s1, 6144, %s34, [#allocation8], 384, 384, 24
    $region9: #{tpu_custom_call.1} parent=1 // pred_fallthru
      _
    // Predicated region
    $region10: #{tpu_custom_call.1} parent=1 // pred_check
      _
    $region11: #{tpu_custom_call.1} parent=1 // pred_check_branch
      %41 = sbr.rel (0) target = $region13
    $region12: #{tpu_custom_call.1} parent=1 // pred_region
      %s43 = ssub.s32 6144, 6144
      %44 = vsyncadd [#allocation8], %s43
      %s45 = sshll.u32 [#allocation9], 4
      %s46 = int_to_ptr.vmem [resolvable:$true] %s45
      %51 = dma.hbm_to_vmem [thread:$0]  %s2, 6144, %s46, [#allocation8], 384, 384, 24
    $region13: #{tpu_custom_call.1} parent=1 // pred_fallthru
      _
    // Predicated region
    $region14: #{tpu_custom_call.1} parent=1 // pred_check
      _
    $region15: #{tpu_custom_call.1} parent=1 // pred_check_branch
      %53 = sbr.rel (0) target = $region17
    $region16: #{tpu_custom_call.1} parent=1 // pred_region
      _
    $region17: #{tpu_custom_call.1} parent=1 // pred_fallthru
      _
    // Predicated region
    $region18: #{tpu_custom_call.1} parent=1 // pred_check
      _
    $region19: #{tpu_custom_call.1} parent=1 // pred_check_branch
      %55 = sbr.rel (0) target = $region21
    $region20: #{tpu_custom_call.1} parent=1 // pred_region
      _
    $region21: #{tpu_custom_call.1} parent=1 // pred_fallthru
      _
    // Predicated region
    $region22: #{tpu_custom_call.1} parent=1 // pred_check
      _
    $region23: #{tpu_custom_call.1} parent=1 // pred_check_branch
      %57 = sbr.rel (0) target = $region25
    $region24: #{tpu_custom_call.1} parent=1 // pred_region
      %s59 = ssub.s32 2048, 2048
      %60 = vsyncadd [#allocation11], %s59
      %s61 = sshll.u32 [#allocation10], 4
      %s62 = int_to_ptr.vmem [resolvable:$true] %s61
      %67 = dma.hbm_to_vmem [thread:$0]  %s5, 2048, %s62, [#allocation11], 128, 128, 8
    $region25: #{tpu_custom_call.1} parent=1 // pred_fallthru
      _
    // Predicated region
    $region26: #{tpu_custom_call.1} parent=1 // pred_check
      _
    $region27: #{tpu_custom_call.1} parent=1 // pred_check_branch
      %69 = sbr.rel (0) target = $region29
    $region28: #{tpu_custom_call.1} parent=1 // pred_region
      _
    $region29: #{tpu_custom_call.1} parent=1 // pred_fallthru
      _
    // Predicated region
    $region30: #{tpu_custom_call.1} parent=1 // pred_check
      _
    $region31: #{tpu_custom_call.1} parent=1 // pred_check_branch
      %71 = sbr.rel (0) target = $region33
    $region32: #{tpu_custom_call.1} parent=1 // pred_region
      %72 = dma.done [#allocation5], 1024
    $region33: #{tpu_custom_call.1} parent=1 // pred_fallthru
      _
    // Predicated region
    $region34: #{tpu_custom_call.1} parent=1 // pred_check
      _
    $region35: #{tpu_custom_call.1} parent=1 // pred_check_branch
      %74 = sbr.rel (0) target = $region37
    $region36: #{tpu_custom_call.1} parent=1 // pred_region
      %75 = dma.done [#allocation8], 6144
    $region37: #{tpu_custom_call.1} parent=1 // pred_fallthru
      _
    // Predicated region
    $region38: #{tpu_custom_call.1} parent=1 // pred_check
      _
    $region39: #{tpu_custom_call.1} parent=1 // pred_check_branch
      %77 = sbr.rel (0) target = $region41
    $region40: #{tpu_custom_call.1} parent=1 // pred_region
      %78 = dma.done [#allocation8], 6144
    $region41: #{tpu_custom_call.1} parent=1 // pred_fallthru
      _
    // Predicated region
    $region42: #{tpu_custom_call.1} parent=1 // pred_check
      _
    $region43: #{tpu_custom_call.1} parent=1 // pred_check_branch
      %80 = sbr.rel (0) target = $region45
    $region44: #{tpu_custom_call.1} parent=1 // pred_region
      %81 = dma.done [#allocation11], 2048
    $region45: #{tpu_custom_call.1} parent=1 // pred_fallthru
      _
    %p82 = scmp.eq.s32.totalorder 0, 0
    // Predicated region
    $region46: #{tpu_custom_call.1} parent=1 // pred_check
      %p83 = pneg %p82
    $region47: #{tpu_custom_call.1} parent=1 // pred_check_branch
      %85 = sbr.rel (%p83) target = $region49
    $region48: #{tpu_custom_call.1} parent=1 // pred_region
      %86 = vst [vmem:[#allocation2] sm:$0xff] 0.0
    $region49: #{tpu_custom_call.1} parent=1 // pred_fallthru
      _
    %v87 = vld [vmem:[#allocation4] sm:$0xff]
    %v88 = vld [vmem:[#allocation4 + $0x8] sm:$0xff]
    %v89 = vld [vmem:[#allocation4 + $0x10] sm:$0xff]
    %v90 = vld [vmem:[#allocation4 + $0x18] sm:$0xff]
    %v91 = vld [vmem:[#allocation4 + $0x20] sm:$0xff]
    %v92 = vld [vmem:[#allocation4 + $0x28] sm:$0xff]
    %v93 = vld [vmem:[#allocation4 + $0x30] sm:$0xff]
    %v94 = vld [vmem:[#allocation4 + $0x38] sm:$0xff]
    %v95 = vld [vmem:[#allocation7] sm:$0xff]
    %v96 = vld [vmem:[#allocation7 + $0x8] sm:$0xff]
    %v97 = vld [vmem:[#allocation7 + $0x10] sm:$0xff]
    %v98 = vld [vmem:[#allocation7 + $0x18] sm:$0xff]
    %v99 = vld [vmem:[#allocation7 + $0x20] sm:$0xff]
    %v100 = vld [vmem:[#allocation7 + $0x28] sm:$0xff]
    %v101 = vld [vmem:[#allocation7 + $0x30] sm:$0xff]
    %v102 = vld [vmem:[#allocation7 + $0x38] sm:$0xff]
    %v103 = vld [vmem:[#allocation7 + $0x40] sm:$0xff]
    %v104 = vld [vmem:[#allocation7 + $0x48] sm:$0xff]
    %v105 = vld [vmem:[#allocation7 + $0x50] sm:$0xff]
    %v106 = vld [vmem:[#allocation7 + $0x58] sm:$0xff]
    %v107 = vld [vmem:[#allocation7 + $0x60] sm:$0xff]
    %v108 = vld [vmem:[#allocation7 + $0x68] sm:$0xff]
    %v109 = vld [vmem:[#allocation7 + $0x70] sm:$0xff]
    %v110 = vld [vmem:[#allocation7 + $0x78] sm:$0xff]
    %v111 = vld [vmem:[#allocation7 + $0x80] sm:$0xff]
    %v112 = vld [vmem:[#allocation7 + $0x88] sm:$0xff]
    %v113 = vld [vmem:[#allocation7 + $0x90] sm:$0xff]
    %v114 = vld [vmem:[#allocation7 + $0x98] sm:$0xff]
    %v115 = vld [vmem:[#allocation7 + $0xa0] sm:$0xff]
    %v116 = vld [vmem:[#allocation7 + $0xa8] sm:$0xff]
    %v117 = vld [vmem:[#allocation7 + $0xb0] sm:$0xff]
    %v118 = vld [vmem:[#allocation7 + $0xb8] sm:$0xff]
    %v119 = vld [vmem:[#allocation7 + $0xc0] sm:$0xff]
    %v120 = vld [vmem:[#allocation7 + $0xc8] sm:$0xff]
    %v121 = vld [vmem:[#allocation7 + $0xd0] sm:$0xff]
    %v122 = vld [vmem:[#allocation7 + $0xd8] sm:$0xff]
    %v123 = vld [vmem:[#allocation7 + $0xe0] sm:$0xff]
    %v124 = vld [vmem:[#allocation7 + $0xe8] sm:$0xff]
    %v125 = vld [vmem:[#allocation7 + $0xf0] sm:$0xff]
    %v126 = vld [vmem:[#allocation7 + $0xf8] sm:$0xff]
    %v127 = vld [vmem:[#allocation7 + $0x100] sm:$0xff]
    %v128 = vld [vmem:[#allocation7 + $0x108] sm:$0xff]
    %v129 = vld [vmem:[#allocation7 + $0x110] sm:$0xff]
    %v130 = vld [vmem:[#allocation7 + $0x118] sm:$0xff]
    %v131 = vld [vmem:[#allocation7 + $0x120] sm:$0xff]
    %v132 = vld [vmem:[#allocation7 + $0x128] sm:$0xff]
    %v133 = vld [vmem:[#allocation7 + $0x130] sm:$0xff]
    %v134 = vld [vmem:[#allocation7 + $0x138] sm:$0xff]
    %v135 = vld [vmem:[#allocation7 + $0x140] sm:$0xff]
    %v136 = vld [vmem:[#allocation7 + $0x148] sm:$0xff]
    %v137 = vld [vmem:[#allocation7 + $0x150] sm:$0xff]
    %v138 = vld [vmem:[#allocation7 + $0x158] sm:$0xff]
    %v139 = vld [vmem:[#allocation7 + $0x160] sm:$0xff]
    %v140 = vld [vmem:[#allocation7 + $0x168] sm:$0xff]
    %v141 = vld [vmem:[#allocation7 + $0x170] sm:$0xff]
    %v142 = vld [vmem:[#allocation7 + $0x178] sm:$0xff]
    %143 = vmatprep.subr.mxu0 %v96
    %144 = vmatpush1.msra.mxu0 %v95
    %145 = vmatprep.subr.mxu0 %v99
    %146 = vmatpush1.msra.mxu0 %v98
    %147 = vmatprep.subr.mxu0 %v102
    %148 = vmatpush1.msra.mxu0 %v101
    %149 = vmatprep.subr.mxu0 %v105
    %150 = vmatpush1.msra.mxu0 %v104
    %151 = vmatprep.subr.mxu0 %v108
    %152 = vmatpush1.msra.mxu0 %v107
    %153 = vmatprep.subr.mxu0 %v111
    %154 = vmatpush1.msra.mxu0 %v110
    %155 = vmatprep.subr.mxu0 %v114
    %156 = vmatpush1.msra.mxu0 %v113
    %157 = vmatprep.subr.mxu0 %v117
    %158 = vmatpush1.msra.mxu0 %v116
    %159 = vmatprep.subr.mxu0 %v120
    %160 = vmatpush1.msra.mxu0 %v119
    %161 = vmatprep.subr.mxu0 %v123
    %162 = vmatpush1.msra.mxu0 %v122
    %163 = vmatprep.subr.mxu0 %v126
    %164 = vmatpush1.msra.mxu0 %v125
    %165 = vmatprep.subr.mxu0 %v129
    %166 = vmatpush1.msra.mxu0 %v128
    %167 = vmatprep.subr.mxu0 %v132
    %168 = vmatpush1.msra.mxu0 %v131
    %169 = vmatprep.subr.mxu0 %v135
    %170 = vmatpush1.msra.mxu0 %v134
    %171 = vmatprep.subr.mxu0 %v138
    %172 = vmatpush1.msra.mxu0 %v137
    %173 = vmatprep.subr.mxu0 %v141
    %174 = vmatpush1.msra.mxu0 %v140
    %175 = vmatprep.subr.mxu0 0.0
    %176 = vmatpush1.msra.mxu0 0.0
    %177 = vmatprep.subr.mxu0 0.0
    %178 = vmatpush1.msra.mxu0 0.0
    %179 = vmatprep.subr.mxu0 0.0
    %180 = vmatpush1.msra.mxu0 0.0
    %181 = vmatprep.subr.mxu0 0.0
    %182 = vmatpush1.msra.mxu0 0.0
    %183 = vmatprep.subr.mxu0 0.0
    %184 = vmatpush1.msra.mxu0 0.0
    %185 = vmatprep.subr.mxu0 0.0
    %186 = vmatpush1.msra.mxu0 0.0
    %187 = vmatprep.subr.mxu0 0.0
    %188 = vmatpush1.msra.mxu0 0.0
    %189 = vmatprep.subr.mxu0 0.0
    %190 = vmatpush1.msra.mxu0 0.0
    %191 = vmatprep.subr.mxu0 0.0
    %192 = vmatpush1.msra.mxu0 0.0
    %193 = vmatprep.subr.mxu0 0.0
    %194 = vmatpush1.msra.mxu0 0.0
    %195 = vmatprep.subr.mxu0 0.0
    %196 = vmatpush1.msra.mxu0 0.0
    %197 = vmatprep.subr.mxu0 0.0
    %198 = vmatpush1.msra.mxu0 0.0
    %199 = vmatprep.subr.mxu0 0.0
    %200 = vmatpush1.msra.mxu0 0.0
    %201 = vmatprep.subr.mxu0 0.0
    %202 = vmatpush1.msra.mxu0 0.0
    %203 = vmatprep.subr.mxu0 0.0
    %204 = vmatpush1.msra.mxu0 0.0
    %205 = vmatprep.subr.mxu0 0.0
    %206 = vmatpush1.msra.mxu0 0.0
    %207 = vmatprep.mubr.f32.mxu0 0.0
    %208 = vmatmul.mubr.f32.gmra.mrb[0].mxu0 %v87
    %v209 = vpop.f32.mrb[0].mxu0
    %v210 = vadd.f32 0.0, %v209
    %v211 = vpop.f32.mrb[0].mxu0
    %v212 = vadd.f32 0.0, %v211
    %213 = vmatprep.mubr.f32.mxu0 0.0
    %214 = vmatmul.mubr.f32.gmra.mrb[0].mxu0 %v88
    %v215 = vpop.f32.mrb[0].mxu0
    %v216 = vadd.f32 0.0, %v215
    %v217 = vpop.f32.mrb[0].mxu0
    %v218 = vadd.f32 0.0, %v217
    %219 = vmatprep.mubr.f32.mxu0 0.0
    %220 = vmatmul.mubr.f32.gmra.mrb[0].mxu0 %v89
    %v221 = vpop.f32.mrb[0].mxu0
    %v222 = vadd.f32 0.0, %v221
    %v223 = vpop.f32.mrb[0].mxu0
    %v224 = vadd.f32 0.0, %v223
    %225 = vmatprep.mubr.f32.mxu0 0.0
    %226 = vmatmul.mubr.f32.gmra.mrb[0].mxu0 %v90
    %v227 = vpop.f32.mrb[0].mxu0
    %v228 = vadd.f32 0.0, %v227
    %v229 = vpop.f32.mrb[0].mxu0
    %v230 = vadd.f32 0.0, %v229
    %231 = vmatprep.mubr.f32.mxu0 0.0
    %232 = vmatmul.mubr.f32.gmra.mrb[0].mxu0 %v91
    %v233 = vpop.f32.mrb[0].mxu0
    %v234 = vadd.f32 0.0, %v233
    %v235 = vpop.f32.mrb[0].mxu0
    %v236 = vadd.f32 0.0, %v235
    %237 = vmatprep.mubr.f32.mxu0 0.0
    %238 = vmatmul.mubr.f32.gmra.mrb[0].mxu0 %v92
    %v239 = vpop.f32.mrb[0].mxu0
    %v240 = vadd.f32 0.0, %v239
    %v241 = vpop.f32.mrb[0].mxu0
    %v242 = vadd.f32 0.0, %v241
    %243 = vmatprep.mubr.f32.mxu0 0.0
    %244 = vmatmul.mubr.f32.gmra.mrb[0].mxu0 %v93
    %v245 = vpop.f32.mrb[0].mxu0
    %v246 = vadd.f32 0.0, %v245
    %v247 = vpop.f32.mrb[0].mxu0
    %v248 = vadd.f32 0.0, %v247
    %249 = vmatprep.mubr.f32.mxu0 0.0
    %250 = vmatmul.mubr.f32.gmra.mrb[0].mxu0 %v94
    %v251 = vpop.f32.mrb[0].mxu0
    %v252 = vadd.f32 0.0, %v251
    %v253 = vpop.f32.mrb[0].mxu0
    %v254 = vadd.f32 0.0, %v253
    %255 = vdwg.mxu0
    %256 = vmatprep.subr.mxu0 0.0
    %257 = vmatpush1.msra.mxu0 %v97
    %258 = vmatprep.subr.mxu0 0.0
    %259 = vmatpush1.msra.mxu0 %v100
    %260 = vmatprep.subr.mxu0 0.0
    %261 = vmatpush1.msra.mxu0 %v103
    %262 = vmatprep.subr.mxu0 0.0
    %263 = vmatpush1.msra.mxu0 %v106
    %264 = vmatprep.subr.mxu0 0.0
    %265 = vmatpush1.msra.mxu0 %v109
    %266 = vmatprep.subr.mxu0 0.0
    %267 = vmatpush1.msra.mxu0 %v112
    %268 = vmatprep.subr.mxu0 0.0
    %269 = vmatpush1.msra.mxu0 %v115
    %270 = vmatprep.subr.mxu0 0.0
    %271 = vmatpush1.msra.mxu0 %v118
    %272 = vmatprep.subr.mxu0 0.0
    %273 = vmatpush1.msra.mxu0 %v121
    %274 = vmatprep.subr.mxu0 0.0
    %275 = vmatpush1.msra.mxu0 %v124
    %276 = vmatprep.subr.mxu0 0.0
    %277 = vmatpush1.msra.mxu0 %v127
    %278 = vmatprep.subr.mxu0 0.0
    %279 = vmatpush1.msra.mxu0 %v130
    %280 = vmatprep.subr.mxu0 0.0
    %281 = vmatpush1.msra.mxu0 %v133
    %282 = vmatprep.subr.mxu0 0.0
    %283 = vmatpush1.msra.mxu0 %v136
    %284 = vmatprep.subr.mxu0 0.0
    %285 = vmatpush1.msra.mxu0 %v139
    %286 = vmatprep.subr.mxu0 0.0
    %287 = vmatpush1.msra.mxu0 %v142
    %288 = vmatprep.subr.mxu0 0.0
    %289 = vmatpush1.msra.mxu0 0.0
    %290 = vmatprep.subr.mxu0 0.0
    %291 = vmatpush1.msra.mxu0 0.0
    %292 = vmatprep.subr.mxu0 0.0
    %293 = vmatpush1.msra.mxu0 0.0
    %294 = vmatprep.subr.mxu0 0.0
    %295 = vmatpush1.msra.mxu0 0.0
    %296 = vmatprep.subr.mxu0 0.0
    %297 = vmatpush1.msra.mxu0 0.0
    %298 = vmatprep.subr.mxu0 0.0
    %299 = vmatpush1.msra.mxu0 0.0
    %300 = vmatprep.subr.mxu0 0.0
    %301 = vmatpush1.msra.mxu0 0.0
    %302 = vmatprep.subr.mxu0 0.0
    %303 = vmatpush1.msra.mxu0 0.0
    %304 = vmatprep.subr.mxu0 0.0
    %305 = vmatpush1.msra.mxu0 0.0
    %306 = vmatprep.subr.mxu0 0.0
    %307 = vmatpush1.msra.mxu0 0.0
    %308 = vmatprep.subr.mxu0 0.0
    %309 = vmatpush1.msra.mxu0 0.0
    %310 = vmatprep.subr.mxu0 0.0
    %311 = vmatpush1.msra.mxu0 0.0
    %312 = vmatprep.subr.mxu0 0.0
    %313 = vmatpush1.msra.mxu0 0.0
    %314 = vmatprep.subr.mxu0 0.0
    %315 = vmatpush1.msra.mxu0 0.0
    %316 = vmatprep.subr.mxu0 0.0
    %317 = vmatpush1.msra.mxu0 0.0
    %318 = vmatprep.subr.mxu0 0.0
    %319 = vmatpush1.msra.mxu0 0.0
    %320 = vmatprep.mubr.f32.mxu0 0.0
    %321 = vmatmul.mubr.f32.gmra.mrb[0].mxu0 %v87
    %v322 = vpop.f32.mrb[0].mxu0
    %v323 = vadd.f32 0.0, %v322
    %v324 = vpop.f32.mrb[0].mxu0
    %325 = vmatprep.mubr.f32.mxu0 0.0
    %326 = vmatmul.mubr.f32.gmra.mrb[0].mxu0 %v88
    %v327 = vpop.f32.mrb[0].mxu0
    %v328 = vadd.f32 0.0, %v327
    %v329 = vpop.f32.mrb[0].mxu0
    %330 = vmatprep.mubr.f32.mxu0 0.0
    %331 = vmatmul.mubr.f32.gmra.mrb[0].mxu0 %v89
    %v332 = vpop.f32.mrb[0].mxu0
    %v333 = vadd.f32 0.0, %v332
    %v334 = vpop.f32.mrb[0].mxu0
    %335 = vmatprep.mubr.f32.mxu0 0.0
    %336 = vmatmul.mubr.f32.gmra.mrb[0].mxu0 %v90
    %v337 = vpop.f32.mrb[0].mxu0
    %v338 = vadd.f32 0.0, %v337
    %v339 = vpop.f32.mrb[0].mxu0
    %340 = vmatprep.mubr.f32.mxu0 0.0
    %341 = vmatmul.mubr.f32.gmra.mrb[0].mxu0 %v91
    %v342 = vpop.f32.mrb[0].mxu0
    %v343 = vadd.f32 0.0, %v342
    %v344 = vpop.f32.mrb[0].mxu0
    %345 = vmatprep.mubr.f32.mxu0 0.0
    %346 = vmatmul.mubr.f32.gmra.mrb[0].mxu0 %v92
    %v347 = vpop.f32.mrb[0].mxu0
    %v348 = vadd.f32 0.0, %v347
    %v349 = vpop.f32.mrb[0].mxu0
    %350 = vmatprep.mubr.f32.mxu0 0.0
    %351 = vmatmul.mubr.f32.gmra.mrb[0].mxu0 %v93
    %v352 = vpop.f32.mrb[0].mxu0
    %v353 = vadd.f32 0.0, %v352
    %v354 = vpop.f32.mrb[0].mxu0
    %355 = vmatprep.mubr.f32.mxu0 0.0
    %356 = vmatmul.mubr.f32.gmra.mrb[0].mxu0 %v94
    %v357 = vpop.f32.mrb[0].mxu0
    %v358 = vadd.f32 0.0, %v357
    %v359 = vpop.f32.mrb[0].mxu0
    %360 = vdwg.mxu0
    %v361 = vld [vmem:[%s3] sm:$0x7]
    %v363 = vlaneseq
    %v364 = vshrl.u32 %v363, 7
    %v365 = vsub.s32 0, %v364
    %v366 = vrot.slane %v361, %v365
    %v367 = vlaneseq
    %v368 = vshrl.u32 %v367, 7
    %v369 = vsub.s32 1, %v368
    %v370 = vrot.slane %v361, %v369
    %v371 = vlaneseq
    %v372 = vshrl.u32 %v371, 7
    %v373 = vsub.s32 2, %v372
    %v374 = vrot.slane %v361, %v373
    %v378 = vadd.f32 %v210, %v366
    %v379 = vadd.f32 %v212, %v370
    %v380 = vadd.f32 %v323, %v374
    %v381 = vadd.f32 %v216, %v366
    %v382 = vadd.f32 %v218, %v370
    %v383 = vadd.f32 %v328, %v374
    %v384 = vadd.f32 %v222, %v366
    %v385 = vadd.f32 %v224, %v370
    %v386 = vadd.f32 %v333, %v374
    %v387 = vadd.f32 %v228, %v366
    %v388 = vadd.f32 %v230, %v370
    %v389 = vadd.f32 %v338, %v374
    %v390 = vadd.f32 %v234, %v366
    %v391 = vadd.f32 %v236, %v370
    %v392 = vadd.f32 %v343, %v374
    %v393 = vadd.f32 %v240, %v366
    %v394 = vadd.f32 %v242, %v370
    %v395 = vadd.f32 %v348, %v374
    %v396 = vadd.f32 %v246, %v366
    %v397 = vadd.f32 %v248, %v370
    %v398 = vadd.f32 %v353, %v374
    %v399 = vadd.f32 %v252, %v366
    %v400 = vadd.f32 %v254, %v370
    %v401 = vadd.f32 %v358, %v374
    %402 = vst [vmem:[#allocation3] sm:$0xff] %v378
    %403 = vst [vmem:[#allocation3 + $0x8] sm:$0xff] %v379
    %404 = vst [vmem:[#allocation3 + $0x10] sm:$0xff] %v380
    %405 = vst [vmem:[#allocation3 + $0x18] sm:$0xff] %v381
    %406 = vst [vmem:[#allocation3 + $0x20] sm:$0xff] %v382
    %407 = vst [vmem:[#allocation3 + $0x28] sm:$0xff] %v383
    %408 = vst [vmem:[#allocation3 + $0x30] sm:$0xff] %v384
    %409 = vst [vmem:[#allocation3 + $0x38] sm:$0xff] %v385
    %410 = vst [vmem:[#allocation3 + $0x40] sm:$0xff] %v386
    %411 = vst [vmem:[#allocation3 + $0x48] sm:$0xff] %v387
    %412 = vst [vmem:[#allocation3 + $0x50] sm:$0xff] %v388
    %413 = vst [vmem:[#allocation3 + $0x58] sm:$0xff] %v389
    %414 = vst [vmem:[#allocation3 + $0x60] sm:$0xff] %v390
    %415 = vst [vmem:[#allocation3 + $0x68] sm:$0xff] %v391
    %416 = vst [vmem:[#allocation3 + $0x70] sm:$0xff] %v392
    %417 = vst [vmem:[#allocation3 + $0x78] sm:$0xff] %v393
    %418 = vst [vmem:[#allocation3 + $0x80] sm:$0xff] %v394
    %419 = vst [vmem:[#allocation3 + $0x88] sm:$0xff] %v395
    %420 = vst [vmem:[#allocation3 + $0x90] sm:$0xff] %v396
    %421 = vst [vmem:[#allocation3 + $0x98] sm:$0xff] %v397
    %422 = vst [vmem:[#allocation3 + $0xa0] sm:$0xff] %v398
    %423 = vst [vmem:[#allocation3 + $0xa8] sm:$0xff] %v399
    %424 = vst [vmem:[#allocation3 + $0xb0] sm:$0xff] %v400
    %425 = vst [vmem:[#allocation3 + $0xb8] sm:$0xff] %v401
    %v426 = vld [vmem:[#allocation9] sm:$0xff]
    %v427 = vld [vmem:[#allocation9 + $0x8] sm:$0xff]
    %v428 = vld [vmem:[#allocation9 + $0x10] sm:$0xff]
    %v429 = vld [vmem:[#allocation9 + $0x18] sm:$0xff]
    %v430 = vld [vmem:[#allocation9 + $0x20] sm:$0xff]
    %v431 = vld [vmem:[#allocation9 + $0x28] sm:$0xff]
    %v432 = vld [vmem:[#allocation9 + $0x30] sm:$0xff]
    %v433 = vld [vmem:[#allocation9 + $0x38] sm:$0xff]
    %v434 = vld [vmem:[#allocation9 + $0x40] sm:$0xff]
    %v435 = vld [vmem:[#allocation9 + $0x48] sm:$0xff]
    %v436 = vld [vmem:[#allocation9 + $0x50] sm:$0xff]
    %v437 = vld [vmem:[#allocation9 + $0x58] sm:$0xff]
    %v438 = vld [vmem:[#allocation9 + $0x60] sm:$0xff]
    %v439 = vld [vmem:[#allocation9 + $0x68] sm:$0xff]
    %v440 = vld [vmem:[#allocation9 + $0x70] sm:$0xff]
    %v441 = vld [vmem:[#allocation9 + $0x78] sm:$0xff]
    %v442 = vld [vmem:[#allocation9 + $0x80] sm:$0xff]
    %v443 = vld [vmem:[#allocation9 + $0x88] sm:$0xff]
    %v444 = vld [vmem:[#allocation9 + $0x90] sm:$0xff]
    %v445 = vld [vmem:[#allocation9 + $0x98] sm:$0xff]
    %v446 = vld [vmem:[#allocation9 + $0xa0] sm:$0xff]
    %v447 = vld [vmem:[#allocation9 + $0xa8] sm:$0xff]
    %v448 = vld [vmem:[#allocation9 + $0xb0] sm:$0xff]
    %v449 = vld [vmem:[#allocation9 + $0xb8] sm:$0xff]
    %v450 = vld [vmem:[#allocation9 + $0xc0] sm:$0xff]
    %v451 = vld [vmem:[#allocation9 + $0xc8] sm:$0xff]
    %v452 = vld [vmem:[#allocation9 + $0xd0] sm:$0xff]
    %v453 = vld [vmem:[#allocation9 + $0xd8] sm:$0xff]
    %v454 = vld [vmem:[#allocation9 + $0xe0] sm:$0xff]
    %v455 = vld [vmem:[#allocation9 + $0xe8] sm:$0xff]
    %v456 = vld [vmem:[#allocation9 + $0xf0] sm:$0xff]
    %v457 = vld [vmem:[#allocation9 + $0xf8] sm:$0xff]
    %v458 = vld [vmem:[#allocation9 + $0x100] sm:$0xff]
    %v459 = vld [vmem:[#allocation9 + $0x108] sm:$0xff]
    %v460 = vld [vmem:[#allocation9 + $0x110] sm:$0xff]
    %v461 = vld [vmem:[#allocation9 + $0x118] sm:$0xff]
    %v462 = vld [vmem:[#allocation9 + $0x120] sm:$0xff]
    %v463 = vld [vmem:[#allocation9 + $0x128] sm:$0xff]
    %v464 = vld [vmem:[#allocation9 + $0x130] sm:$0xff]
    %v465 = vld [vmem:[#allocation9 + $0x138] sm:$0xff]
    %v466 = vld [vmem:[#allocation9 + $0x140] sm:$0xff]
    %v467 = vld [vmem:[#allocation9 + $0x148] sm:$0xff]
    %v468 = vld [vmem:[#allocation9 + $0x150] sm:$0xff]
    %v469 = vld [vmem:[#allocation9 + $0x158] sm:$0xff]
    %v470 = vld [vmem:[#allocation9 + $0x160] sm:$0xff]
    %v471 = vld [vmem:[#allocation9 + $0x168] sm:$0xff]
    %v472 = vld [vmem:[#allocation9 + $0x170] sm:$0xff]
    %v473 = vld [vmem:[#allocation9 + $0x178] sm:$0xff]
    %v474 = vld [vmem:[%s4] sm:$0x1]
    %v476 = vlaneseq
    %v477 = vshrl.u32 %v476, 7
    %v478 = vsub.s32 0, %v477
    %v479 = vrot.slane %v474, %v478
    %v481 = vld [vmem:[#allocation2] sm:$0xff]
    %v482 = vld [vmem:[#allocation3] sm:$0xff]
    %v483 = vld [vmem:[#allocation3 + $0x8] sm:$0xff]
    %v484 = vld [vmem:[#allocation3 + $0x10] sm:$0xff]
    %485 = vmatprep.subr.mxu0 %v427
    %486 = vmatpush1.msra.mxu0 %v426
    %487 = vmatprep.subr.mxu0 %v430
    %488 = vmatpush1.msra.mxu0 %v429
    %489 = vmatprep.subr.mxu0 %v433
    %490 = vmatpush1.msra.mxu0 %v432
    %491 = vmatprep.subr.mxu0 %v436
    %492 = vmatpush1.msra.mxu0 %v435
    %493 = vmatprep.subr.mxu0 %v439
    %494 = vmatpush1.msra.mxu0 %v438
    %495 = vmatprep.subr.mxu0 %v442
    %496 = vmatpush1.msra.mxu0 %v441
    %497 = vmatprep.subr.mxu0 %v445
    %498 = vmatpush1.msra.mxu0 %v444
    %499 = vmatprep.subr.mxu0 %v448
    %500 = vmatpush1.msra.mxu0 %v447
    %501 = vmatprep.subr.mxu0 %v451
    %502 = vmatpush1.msra.mxu0 %v450
    %503 = vmatprep.subr.mxu0 %v454
    %504 = vmatpush1.msra.mxu0 %v453
    %505 = vmatprep.subr.mxu0 %v457
    %506 = vmatpush1.msra.mxu0 %v456
    %507 = vmatprep.subr.mxu0 %v460
    %508 = vmatpush1.msra.mxu0 %v459
    %509 = vmatprep.subr.mxu0 %v463
    %510 = vmatpush1.msra.mxu0 %v462
    %511 = vmatprep.subr.mxu0 %v466
    %512 = vmatpush1.msra.mxu0 %v465
    %513 = vmatprep.subr.mxu0 %v469
    %514 = vmatpush1.msra.mxu0 %v468
    %515 = vmatprep.subr.mxu0 %v472
    %516 = vmatpush1.msra.mxu0 %v471
    %517 = vmatprep.subr.mxu0 0.0
    %518 = vmatpush1.msra.mxu0 0.0
    %519 = vmatprep.subr.mxu0 0.0
    %520 = vmatpush1.msra.mxu0 0.0
    %521 = vmatprep.subr.mxu0 0.0
    %522 = vmatpush1.msra.mxu0 0.0
    %523 = vmatprep.subr.mxu0 0.0
    %524 = vmatpush1.msra.mxu0 0.0
    %525 = vmatprep.subr.mxu0 0.0
    %526 = vmatpush1.msra.mxu0 0.0
    %527 = vmatprep.subr.mxu0 0.0
    %528 = vmatpush1.msra.mxu0 0.0
    %529 = vmatprep.subr.mxu0 0.0
    %530 = vmatpush1.msra.mxu0 0.0
    %531 = vmatprep.subr.mxu0 0.0
    %532 = vmatpush1.msra.mxu0 0.0
    %533 = vmatprep.subr.mxu0 0.0
    %534 = vmatpush1.msra.mxu0 0.0
    %535 = vmatprep.subr.mxu0 0.0
    %536 = vmatpush1.msra.mxu0 0.0
    %537 = vmatprep.subr.mxu0 0.0
    %538 = vmatpush1.msra.mxu0 0.0
    %539 = vmatprep.subr.mxu0 0.0
    %540 = vmatpush1.msra.mxu0 0.0
    %541 = vmatprep.subr.mxu0 0.0
    %542 = vmatpush1.msra.mxu0 0.0
    %543 = vmatprep.subr.mxu0 0.0
    %544 = vmatpush1.msra.mxu0 0.0
    %545 = vmatprep.subr.mxu0 0.0
    %546 = vmatpush1.msra.mxu0 0.0
    %547 = vmatprep.subr.mxu0 0.0
    %548 = vmatpush1.msra.mxu0 0.0
    %549 = vmatprep.mubr.f32.mxu0 0.0
    %550 = vmatmul.mubr.f32.gmra.mrb[0].mxu0 %v481
    %v551 = vpop.f32.mrb[0].mxu0
    %v552 = vadd.f32 0.0, %v551
    %v553 = vpop.f32.mrb[0].mxu0
    %v554 = vadd.f32 0.0, %v553
    %555 = vdwg.mxu0
    %556 = vmatprep.subr.mxu0 0.0
    %557 = vmatpush1.msra.mxu0 %v428
    %558 = vmatprep.subr.mxu0 0.0
    %559 = vmatpush1.msra.mxu0 %v431
    %560 = vmatprep.subr.mxu0 0.0
    %561 = vmatpush1.msra.mxu0 %v434
    %562 = vmatprep.subr.mxu0 0.0
    %563 = vmatpush1.msra.mxu0 %v437
    %564 = vmatprep.subr.mxu0 0.0
    %565 = vmatpush1.msra.mxu0 %v440
    %566 = vmatprep.subr.mxu0 0.0
    %567 = vmatpush1.msra.mxu0 %v443
    %568 = vmatprep.subr.mxu0 0.0
    %569 = vmatpush1.msra.mxu0 %v446
    %570 = vmatprep.subr.mxu0 0.0
    %571 = vmatpush1.msra.mxu0 %v449
    %572 = vmatprep.subr.mxu0 0.0
    %573 = vmatpush1.msra.mxu0 %v452
    %574 = vmatprep.subr.mxu0 0.0
    %575 = vmatpush1.msra.mxu0 %v455
    %576 = vmatprep.subr.mxu0 0.0
    %577 = vmatpush1.msra.mxu0 %v458
    %578 = vmatprep.subr.mxu0 0.0
    %579 = vmatpush1.msra.mxu0 %v461
    %580 = vmatprep.subr.mxu0 0.0
    %581 = vmatpush1.msra.mxu0 %v464
    %582 = vmatprep.subr.mxu0 0.0
    %583 = vmatpush1.msra.mxu0 %v467
    %584 = vmatprep.subr.mxu0 0.0
    %585 = vmatpush1.msra.mxu0 %v470
    %586 = vmatprep.subr.mxu0 0.0
    %587 = vmatpush1.msra.mxu0 %v473
    %588 = vmatprep.subr.mxu0 0.0
    %589 = vmatpush1.msra.mxu0 0.0
    %590 = vmatprep.subr.mxu0 0.0
    %591 = vmatpush1.msra.mxu0 0.0
    %592 = vmatprep.subr.mxu0 0.0
    %593 = vmatpush1.msra.mxu0 0.0
    %594 = vmatprep.subr.mxu0 0.0
    %595 = vmatpush1.msra.mxu0 0.0
    %596 = vmatprep.subr.mxu0 0.0
    %597 = vmatpush1.msra.mxu0 0.0
    %598 = vmatprep.subr.mxu0 0.0
    %599 = vmatpush1.msra.mxu0 0.0
    %600 = vmatprep.subr.mxu0 0.0
    %601 = vmatpush1.msra.mxu0 0.0
    %602 = vmatprep.subr.mxu0 0.0
    %603 = vmatpush1.msra.mxu0 0.0
    %604 = vmatprep.subr.mxu0 0.0
    %605 = vmatpush1.msra.mxu0 0.0
    %606 = vmatprep.subr.mxu0 0.0
    %607 = vmatpush1.msra.mxu0 0.0
    %608 = vmatprep.subr.mxu0 0.0
    %609 = vmatpush1.msra.mxu0 0.0
    %610 = vmatprep.subr.mxu0 0.0
    %611 = vmatpush1.msra.mxu0 0.0
    %612 = vmatprep.subr.mxu0 0.0
    %613 = vmatpush1.msra.mxu0 0.0
    %614 = vmatprep.subr.mxu0 0.0
    %615 = vmatpush1.msra.mxu0 0.0
    %616 = vmatprep.subr.mxu0 0.0
    %617 = vmatpush1.msra.mxu0 0.0
    %618 = vmatprep.subr.mxu0 0.0
    %619 = vmatpush1.msra.mxu0 0.0
    %620 = vmatprep.mubr.f32.mxu0 0.0
    %621 = vmatmul.mubr.f32.gmra.mrb[0].mxu0 %v481
    %v622 = vpop.f32.mrb[0].mxu0
    %v623 = vadd.f32 0.0, %v622
    %v624 = vpop.f32.mrb[0].mxu0
    %625 = vdwg.mxu0
    %v626 = vadd.f32 %v482, %v552
    %v627 = vxor.u32 %v626, 2147483648
    %v628 = vmul.f32 %v627, 1.442695
    %v629 = vpow.pop %v628
    %v630 = vadd.f32 %v629, 1.0
    %v631 = vrcp.pop %v630
    %v632 = vmul.f32 1.0, %v631
    %v633 = vadd.f32 %v483, %v554
    %v634 = vxor.u32 %v633, 2147483648
    %v635 = vmul.f32 %v634, 1.442695
    %v636 = vpow.pop %v635
    %v637 = vadd.f32 %v636, 1.0
    %v638 = vrcp.pop %v637
    %v639 = vmul.f32 1.0, %v638
    %v640 = vadd.f32 %v623, %v479
    %v641 = vmul.f32 %v632, %v640
    %v642 = vadd.f32 %v484, %v641
    %v643 = vtanh.pop %v642
    %v644 = vsub.f32 1.0, %v639
    %v645 = vmul.f32 %v644, %v643
    %v646 = vmul.f32 %v639, %v481
    %v647 = vadd.f32 %v645, %v646
    %s648 = scalar_lea.vmem [#allocation3], 24
    %v649 = vld [vmem:[%s648] sm:$0xff]
    %v650 = vld [vmem:[%s648 + $0x8] sm:$0xff]
    %v651 = vld [vmem:[%s648 + $0x10] sm:$0xff]
    %652 = vmatprep.subr.mxu0 %v427
    %653 = vmatpush1.msra.mxu0 %v426
    %654 = vmatprep.subr.mxu0 %v430
    %655 = vmatpush1.msra.mxu0 %v429
    %656 = vmatprep.subr.mxu0 %v433
    %657 = vmatpush1.msra.mxu0 %v432
    %658 = vmatprep.subr.mxu0 %v436
    %659 = vmatpush1.msra.mxu0 %v435
    %660 = vmatprep.subr.mxu0 %v439
    %661 = vmatpush1.msra.mxu0 %v438
    %662 = vmatprep.subr.mxu0 %v442
    %663 = vmatpush1.msra.mxu0 %v441
    %664 = vmatprep.subr.mxu0 %v445
    %665 = vmatpush1.msra.mxu0 %v444
    %666 = vmatprep.subr.mxu0 %v448
    %667 = vmatpush1.msra.mxu0 %v447
    %668 = vmatprep.subr.mxu0 %v451
    %669 = vmatpush1.msra.mxu0 %v450
    %670 = vmatprep.subr.mxu0 %v454
    %671 = vmatpush1.msra.mxu0 %v453
    %672 = vmatprep.subr.mxu0 %v457
    %673 = vmatpush1.msra.mxu0 %v456
    %674 = vmatprep.subr.mxu0 %v460
    %675 = vmatpush1.msra.mxu0 %v459
    %676 = vmatprep.subr.mxu0 %v463
    %677 = vmatpush1.msra.mxu0 %v462
    %678 = vmatprep.subr.mxu0 %v466
    %679 = vmatpush1.msra.mxu0 %v465
    %680 = vmatprep.subr.mxu0 %v469
    %681 = vmatpush1.msra.mxu0 %v468
    %682 = vmatprep.subr.mxu0 %v472
    %683 = vmatpush1.msra.mxu0 %v471
    %684 = vmatprep.subr.mxu0 0.0
    %685 = vmatpush1.msra.mxu0 0.0
    %686 = vmatprep.subr.mxu0 0.0
    %687 = vmatpush1.msra.mxu0 0.0
    %688 = vmatprep.subr.mxu0 0.0
    %689 = vmatpush1.msra.mxu0 0.0
    %690 = vmatprep.subr.mxu0 0.0
    %691 = vmatpush1.msra.mxu0 0.0
    %692 = vmatprep.subr.mxu0 0.0
    %693 = vmatpush1.msra.mxu0 0.0
    %694 = vmatprep.subr.mxu0 0.0
    %695 = vmatpush1.msra.mxu0 0.0
    %696 = vmatprep.subr.mxu0 0.0
    %697 = vmatpush1.msra.mxu0 0.0
    %698 = vmatprep.subr.mxu0 0.0
    %699 = vmatpush1.msra.mxu0 0.0
    %700 = vmatprep.subr.mxu0 0.0
    %701 = vmatpush1.msra.mxu0 0.0
    %702 = vmatprep.subr.mxu0 0.0
    %703 = vmatpush1.msra.mxu0 0.0
    %704 = vmatprep.subr.mxu0 0.0
    %705 = vmatpush1.msra.mxu0 0.0
    %706 = vmatprep.subr.mxu0 0.0
    %707 = vmatpush1.msra.mxu0 0.0
    %708 = vmatprep.subr.mxu0 0.0
    %709 = vmatpush1.msra.mxu0 0.0
    %710 = vmatprep.subr.mxu0 0.0
    %711 = vmatpush1.msra.mxu0 0.0
    %712 = vmatprep.subr.mxu0 0.0
    %713 = vmatpush1.msra.mxu0 0.0
    %714 = vmatprep.subr.mxu0 0.0
    %715 = vmatpush1.msra.mxu0 0.0
    %716 = vmatprep.mubr.f32.mxu0 0.0
    %717 = vmatmul.mubr.f32.gmra.mrb[0].mxu0 %v647
    %v718 = vpop.f32.mrb[0].mxu0
    %v719 = vadd.f32 0.0, %v718
    %v720 = vpop.f32.mrb[0].mxu0
    %v721 = vadd.f32 0.0, %v720
    %722 = vdwg.mxu0
    %723 = vmatprep.subr.mxu0 0.0
    %724 = vmatpush1.msra.mxu0 %v428
    %725 = vmatprep.subr.mxu0 0.0
    %726 = vmatpush1.msra.mxu0 %v431
    %727 = vmatprep.subr.mxu0 0.0
    %728 = vmatpush1.msra.mxu0 %v434
    %729 = vmatprep.subr.mxu0 0.0
    %730 = vmatpush1.msra.mxu0 %v437
    %731 = vmatprep.subr.mxu0 0.0
    %732 = vmatpush1.msra.mxu0 %v440
    %733 = vmatprep.subr.mxu0 0.0
    %734 = vmatpush1.msra.mxu0 %v443
    %735 = vmatprep.subr.mxu0 0.0
    %736 = vmatpush1.msra.mxu0 %v446
    %737 = vmatprep.subr.mxu0 0.0
    %738 = vmatpush1.msra.mxu0 %v449
    %739 = vmatprep.subr.mxu0 0.0
    %740 = vmatpush1.msra.mxu0 %v452
    %741 = vmatprep.subr.mxu0 0.0
    %742 = vmatpush1.msra.mxu0 %v455
    %743 = vmatprep.subr.mxu0 0.0
    %744 = vmatpush1.msra.mxu0 %v458
    %745 = vmatprep.subr.mxu0 0.0
    %746 = vmatpush1.msra.mxu0 %v461
    %747 = vmatprep.subr.mxu0 0.0
    %748 = vmatpush1.msra.mxu0 %v464
    %749 = vmatprep.subr.mxu0 0.0
    %750 = vmatpush1.msra.mxu0 %v467
    %751 = vmatprep.subr.mxu0 0.0
    %752 = vmatpush1.msra.mxu0 %v470
    %753 = vmatprep.subr.mxu0 0.0
    %754 = vmatpush1.msra.mxu0 %v473
    %755 = vmatprep.subr.mxu0 0.0
    %756 = vmatpush1.msra.mxu0 0.0
    %757 = vmatprep.subr.mxu0 0.0
    %758 = vmatpush1.msra.mxu0 0.0
    %759 = vmatprep.subr.mxu0 0.0
    %760 = vmatpush1.msra.mxu0 0.0
    %761 = vmatprep.subr.mxu0 0.0
    %762 = vmatpush1.msra.mxu0 0.0
    %763 = vmatprep.subr.mxu0 0.0
    %764 = vmatpush1.msra.mxu0 0.0
    %765 = vmatprep.subr.mxu0 0.0
    %766 = vmatpush1.msra.mxu0 0.0
    %767 = vmatprep.subr.mxu0 0.0
    %768 = vmatpush1.msra.mxu0 0.0
    %769 = vmatprep.subr.mxu0 0.0
    %770 = vmatpush1.msra.mxu0 0.0
    %771 = vmatprep.subr.mxu0 0.0
    %772 = vmatpush1.msra.mxu0 0.0
    %773 = vmatprep.subr.mxu0 0.0
    %774 = vmatpush1.msra.mxu0 0.0
    %775 = vmatprep.subr.mxu0 0.0
    %776 = vmatpush1.msra.mxu0 0.0
    %777 = vmatprep.subr.mxu0 0.0
    %778 = vmatpush1.msra.mxu0 0.0
    %779 = vmatprep.subr.mxu0 0.0
    %780 = vmatpush1.msra.mxu0 0.0
    %781 = vmatprep.subr.mxu0 0.0
    %782 = vmatpush1.msra.mxu0 0.0
    %783 = vmatprep.subr.mxu0 0.0
    %784 = vmatpush1.msra.mxu0 0.0
    %785 = vmatprep.subr.mxu0 0.0
    %786 = vmatpush1.msra.mxu0 0.0
    %787 = vmatprep.mubr.f32.mxu0 0.0
    %788 = vmatmul.mubr.f32.gmra.mrb[0].mxu0 %v647
    %v789 = vpop.f32.mrb[0].mxu0
    %v790 = vadd.f32 0.0, %v789
    %v791 = vpop.f32.mrb[0].mxu0
    %792 = vdwg.mxu0
    %v793 = vadd.f32 %v649, %v719
    %v794 = vxor.u32 %v793, 2147483648
    %v795 = vmul.f32 %v794, 1.442695
    %v796 = vpow.pop %v795
    %v797 = vadd.f32 %v796, 1.0
    %v798 = vrcp.pop %v797
    %v799 = vmul.f32 1.0, %v798
    %v800 = vadd.f32 %v650, %v721
    %v801 = vxor.u32 %v800, 2147483648
    %v802 = vmul.f32 %v801, 1.442695
    %v803 = vpow.pop %v802
    %v804 = vadd.f32 %v803, 1.0
    %v805 = vrcp.pop %v804
    %v806 = vmul.f32 1.0, %v805
    %v807 = vadd.f32 %v790, %v479
    %v808 = vmul.f32 %v799, %v807
    %v809 = vadd.f32 %v651, %v808
    %v810 = vtanh.pop %v809
    %v811 = vsub.f32 1.0, %v806
    %v812 = vmul.f32 %v811, %v810
    %v813 = vmul.f32 %v806, %v647
    %v814 = vadd.f32 %v812, %v813
    %s815 = scalar_lea.vmem [#allocation3], 48
    %v816 = vld [vmem:[%s815] sm:$0xff]
    %v817 = vld [vmem:[%s815 + $0x8] sm:$0xff]
    %v818 = vld [vmem:[%s815 + $0x10] sm:$0xff]
    %819 = vmatprep.subr.mxu0 %v427
    %820 = vmatpush1.msra.mxu0 %v426
    %821 = vmatprep.subr.mxu0 %v430
    %822 = vmatpush1.msra.mxu0 %v429
    %823 = vmatprep.subr.mxu0 %v433
    %824 = vmatpush1.msra.mxu0 %v432
    %825 = vmatprep.subr.mxu0 %v436
    %826 = vmatpush1.msra.mxu0 %v435
    %827 = vmatprep.subr.mxu0 %v439
    %828 = vmatpush1.msra.mxu0 %v438
    %829 = vmatprep.subr.mxu0 %v442
    %830 = vmatpush1.msra.mxu0 %v441
    %831 = vmatprep.subr.mxu0 %v445
    %832 = vmatpush1.msra.mxu0 %v444
    %833 = vmatprep.subr.mxu0 %v448
    %834 = vmatpush1.msra.mxu0 %v447
    %835 = vmatprep.subr.mxu0 %v451
    %836 = vmatpush1.msra.mxu0 %v450
    %837 = vmatprep.subr.mxu0 %v454
    %838 = vmatpush1.msra.mxu0 %v453
    %839 = vmatprep.subr.mxu0 %v457
    %840 = vmatpush1.msra.mxu0 %v456
    %841 = vmatprep.subr.mxu0 %v460
    %842 = vmatpush1.msra.mxu0 %v459
    %843 = vmatprep.subr.mxu0 %v463
    %844 = vmatpush1.msra.mxu0 %v462
    %845 = vmatprep.subr.mxu0 %v466
    %846 = vmatpush1.msra.mxu0 %v465
    %847 = vmatprep.subr.mxu0 %v469
    %848 = vmatpush1.msra.mxu0 %v468
    %849 = vmatprep.subr.mxu0 %v472
    %850 = vmatpush1.msra.mxu0 %v471
    %851 = vmatprep.subr.mxu0 0.0
    %852 = vmatpush1.msra.mxu0 0.0
    %853 = vmatprep.subr.mxu0 0.0
    %854 = vmatpush1.msra.mxu0 0.0
    %855 = vmatprep.subr.mxu0 0.0
    %856 = vmatpush1.msra.mxu0 0.0
    %857 = vmatprep.subr.mxu0 0.0
    %858 = vmatpush1.msra.mxu0 0.0
    %859 = vmatprep.subr.mxu0 0.0
    %860 = vmatpush1.msra.mxu0 0.0
    %861 = vmatprep.subr.mxu0 0.0
    %862 = vmatpush1.msra.mxu0 0.0
    %863 = vmatprep.subr.mxu0 0.0
    %864 = vmatpush1.msra.mxu0 0.0
    %865 = vmatprep.subr.mxu0 0.0
    %866 = vmatpush1.msra.mxu0 0.0
    %867 = vmatprep.subr.mxu0 0.0
    %868 = vmatpush1.msra.mxu0 0.0
    %869 = vmatprep.subr.mxu0 0.0
    %870 = vmatpush1.msra.mxu0 0.0
    %871 = vmatprep.subr.mxu0 0.0
    %872 = vmatpush1.msra.mxu0 0.0
    %873 = vmatprep.subr.mxu0 0.0
    %874 = vmatpush1.msra.mxu0 0.0
    %875 = vmatprep.subr.mxu0 0.0
    %876 = vmatpush1.msra.mxu0 0.0
    %877 = vmatprep.subr.mxu0 0.0
    %878 = vmatpush1.msra.mxu0 0.0
    %879 = vmatprep.subr.mxu0 0.0
    %880 = vmatpush1.msra.mxu0 0.0
    %881 = vmatprep.subr.mxu0 0.0
    %882 = vmatpush1.msra.mxu0 0.0
    %883 = vmatprep.mubr.f32.mxu0 0.0
    %884 = vmatmul.mubr.f32.gmra.mrb[0].mxu0 %v814
    %v885 = vpop.f32.mrb[0].mxu0
    %v886 = vadd.f32 0.0, %v885
    %v887 = vpop.f32.mrb[0].mxu0
    %v888 = vadd.f32 0.0, %v887
    %889 = vdwg.mxu0
    %890 = vmatprep.subr.mxu0 0.0
    %891 = vmatpush1.msra.mxu0 %v428
    %892 = vmatprep.subr.mxu0 0.0
    %893 = vmatpush1.msra.mxu0 %v431
    %894 = vmatprep.subr.mxu0 0.0
    %895 = vmatpush1.msra.mxu0 %v434
    %896 = vmatprep.subr.mxu0 0.0
    %897 = vmatpush1.msra.mxu0 %v437
    %898 = vmatprep.subr.mxu0 0.0
    %899 = vmatpush1.msra.mxu0 %v440
    %900 = vmatprep.subr.mxu0 0.0
    %901 = vmatpush1.msra.mxu0 %v443
    %902 = vmatprep.subr.mxu0 0.0
    %903 = vmatpush1.msra.mxu0 %v446
    %904 = vmatprep.subr.mxu0 0.0
    %905 = vmatpush1.msra.mxu0 %v449
    %906 = vmatprep.subr.mxu0 0.0
    %907 = vmatpush1.msra.mxu0 %v452
    %908 = vmatprep.subr.mxu0 0.0
    %909 = vmatpush1.msra.mxu0 %v455
    %910 = vmatprep.subr.mxu0 0.0
    %911 = vmatpush1.msra.mxu0 %v458
    %912 = vmatprep.subr.mxu0 0.0
    %913 = vmatpush1.msra.mxu0 %v461
    %914 = vmatprep.subr.mxu0 0.0
    %915 = vmatpush1.msra.mxu0 %v464
    %916 = vmatprep.subr.mxu0 0.0
    %917 = vmatpush1.msra.mxu0 %v467
    %918 = vmatprep.subr.mxu0 0.0
    %919 = vmatpush1.msra.mxu0 %v470
    %920 = vmatprep.subr.mxu0 0.0
    %921 = vmatpush1.msra.mxu0 %v473
    %922 = vmatprep.subr.mxu0 0.0
    %923 = vmatpush1.msra.mxu0 0.0
    %924 = vmatprep.subr.mxu0 0.0
    %925 = vmatpush1.msra.mxu0 0.0
    %926 = vmatprep.subr.mxu0 0.0
    %927 = vmatpush1.msra.mxu0 0.0
    %928 = vmatprep.subr.mxu0 0.0
    %929 = vmatpush1.msra.mxu0 0.0
    %930 = vmatprep.subr.mxu0 0.0
    %931 = vmatpush1.msra.mxu0 0.0
    %932 = vmatprep.subr.mxu0 0.0
    %933 = vmatpush1.msra.mxu0 0.0
    %934 = vmatprep.subr.mxu0 0.0
    %935 = vmatpush1.msra.mxu0 0.0
    %936 = vmatprep.subr.mxu0 0.0
    %937 = vmatpush1.msra.mxu0 0.0
    %938 = vmatprep.subr.mxu0 0.0
    %939 = vmatpush1.msra.mxu0 0.0
    %940 = vmatprep.subr.mxu0 0.0
    %941 = vmatpush1.msra.mxu0 0.0
    %942 = vmatprep.subr.mxu0 0.0
    %943 = vmatpush1.msra.mxu0 0.0
    %944 = vmatprep.subr.mxu0 0.0
    %945 = vmatpush1.msra.mxu0 0.0
    %946 = vmatprep.subr.mxu0 0.0
    %947 = vmatpush1.msra.mxu0 0.0
    %948 = vmatprep.subr.mxu0 0.0
    %949 = vmatpush1.msra.mxu0 0.0
    %950 = vmatprep.subr.mxu0 0.0
    %951 = vmatpush1.msra.mxu0 0.0
    %952 = vmatprep.subr.mxu0 0.0
    %953 = vmatpush1.msra.mxu0 0.0
    %954 = vmatprep.mubr.f32.mxu0 0.0
    %955 = vmatmul.mubr.f32.gmra.mrb[0].mxu0 %v814
    %v956 = vpop.f32.mrb[0].mxu0
    %v957 = vadd.f32 0.0, %v956
    %v958 = vpop.f32.mrb[0].mxu0
    %959 = vdwg.mxu0
    %v960 = vadd.f32 %v816, %v886
    %v961 = vxor.u32 %v960, 2147483648
    %v962 = vmul.f32 %v961, 1.442695
    %v963 = vpow.pop %v962
    %v964 = vadd.f32 %v963, 1.0
    %v965 = vrcp.pop %v964
    %v966 = vmul.f32 1.0, %v965
    %v967 = vadd.f32 %v817, %v888
    %v968 = vxor.u32 %v967, 2147483648
    %v969 = vmul.f32 %v968, 1.442695
    %v970 = vpow.pop %v969
    %v971 = vadd.f32 %v970, 1.0
    %v972 = vrcp.pop %v971
    %v973 = vmul.f32 1.0, %v972
    %v974 = vadd.f32 %v957, %v479
    %v975 = vmul.f32 %v966, %v974
    %v976 = vadd.f32 %v818, %v975
    %v977 = vtanh.pop %v976
    %v978 = vsub.f32 1.0, %v973
    %v979 = vmul.f32 %v978, %v977
    %v980 = vmul.f32 %v973, %v814
    %v981 = vadd.f32 %v979, %v980
    %s982 = scalar_lea.vmem [#allocation3], 72
    %v983 = vld [vmem:[%s982] sm:$0xff]
    %v984 = vld [vmem:[%s982 + $0x8] sm:$0xff]
    %v985 = vld [vmem:[%s982 + $0x10] sm:$0xff]
    %986 = vmatprep.subr.mxu0 %v427
    %987 = vmatpush1.msra.mxu0 %v426
    %988 = vmatprep.subr.mxu0 %v430
    %989 = vmatpush1.msra.mxu0 %v429
    %990 = vmatprep.subr.mxu0 %v433
    %991 = vmatpush1.msra.mxu0 %v432
    %992 = vmatprep.subr.mxu0 %v436
    %993 = vmatpush1.msra.mxu0 %v435
    %994 = vmatprep.subr.mxu0 %v439
    %995 = vmatpush1.msra.mxu0 %v438
    %996 = vmatprep.subr.mxu0 %v442
    %997 = vmatpush1.msra.mxu0 %v441
    %998 = vmatprep.subr.mxu0 %v445
    %999 = vmatpush1.msra.mxu0 %v444
    %1000 = vmatprep.subr.mxu0 %v448
    %1001 = vmatpush1.msra.mxu0 %v447
    %1002 = vmatprep.subr.mxu0 %v451
    %1003 = vmatpush1.msra.mxu0 %v450
    %1004 = vmatprep.subr.mxu0 %v454
    %1005 = vmatpush1.msra.mxu0 %v453
    %1006 = vmatprep.subr.mxu0 %v457
    %1007 = vmatpush1.msra.mxu0 %v456
    %1008 = vmatprep.subr.mxu0 %v460
    %1009 = vmatpush1.msra.mxu0 %v459
    %1010 = vmatprep.subr.mxu0 %v463
    %1011 = vmatpush1.msra.mxu0 %v462
    %1012 = vmatprep.subr.mxu0 %v466
    %1013 = vmatpush1.msra.mxu0 %v465
    %1014 = vmatprep.subr.mxu0 %v469
    %1015 = vmatpush1.msra.mxu0 %v468
    %1016 = vmatprep.subr.mxu0 %v472
    %1017 = vmatpush1.msra.mxu0 %v471
    %1018 = vmatprep.subr.mxu0 0.0
    %1019 = vmatpush1.msra.mxu0 0.0
    %1020 = vmatprep.subr.mxu0 0.0
    %1021 = vmatpush1.msra.mxu0 0.0
    %1022 = vmatprep.subr.mxu0 0.0
    %1023 = vmatpush1.msra.mxu0 0.0
    %1024 = vmatprep.subr.mxu0 0.0
    %1025 = vmatpush1.msra.mxu0 0.0
    %1026 = vmatprep.subr.mxu0 0.0
    %1027 = vmatpush1.msra.mxu0 0.0
    %1028 = vmatprep.subr.mxu0 0.0
    %1029 = vmatpush1.msra.mxu0 0.0
    %1030 = vmatprep.subr.mxu0 0.0
    %1031 = vmatpush1.msra.mxu0 0.0
    %1032 = vmatprep.subr.mxu0 0.0
    %1033 = vmatpush1.msra.mxu0 0.0
    %1034 = vmatprep.subr.mxu0 0.0
    %1035 = vmatpush1.msra.mxu0 0.0
    %1036 = vmatprep.subr.mxu0 0.0
    %1037 = vmatpush1.msra.mxu0 0.0
    %1038 = vmatprep.subr.mxu0 0.0
    %1039 = vmatpush1.msra.mxu0 0.0
    %1040 = vmatprep.subr.mxu0 0.0
    %1041 = vmatpush1.msra.mxu0 0.0
    %1042 = vmatprep.subr.mxu0 0.0
    %1043 = vmatpush1.msra.mxu0 0.0
    %1044 = vmatprep.subr.mxu0 0.0
    %1045 = vmatpush1.msra.mxu0 0.0
    %1046 = vmatprep.subr.mxu0 0.0
    %1047 = vmatpush1.msra.mxu0 0.0
    %1048 = vmatprep.subr.mxu0 0.0
    %1049 = vmatpush1.msra.mxu0 0.0
    %1050 = vmatprep.mubr.f32.mxu0 0.0
    %1051 = vmatmul.mubr.f32.gmra.mrb[0].mxu0 %v981
    %v1052 = vpop.f32.mrb[0].mxu0
    %v1053 = vadd.f32 0.0, %v1052
    %v1054 = vpop.f32.mrb[0].mxu0
    %v1055 = vadd.f32 0.0, %v1054
    %1056 = vdwg.mxu0
    %1057 = vmatprep.subr.mxu0 0.0
    %1058 = vmatpush1.msra.mxu0 %v428
    %1059 = vmatprep.subr.mxu0 0.0
    %1060 = vmatpush1.msra.mxu0 %v431
    %1061 = vmatprep.subr.mxu0 0.0
    %1062 = vmatpush1.msra.mxu0 %v434
    %1063 = vmatprep.subr.mxu0 0.0
    %1064 = vmatpush1.msra.mxu0 %v437
    %1065 = vmatprep.subr.mxu0 0.0
    %1066 = vmatpush1.msra.mxu0 %v440
    %1067 = vmatprep.subr.mxu0 0.0
    %1068 = vmatpush1.msra.mxu0 %v443
    %1069 = vmatprep.subr.mxu0 0.0
    %1070 = vmatpush1.msra.mxu0 %v446
    %1071 = vmatprep.subr.mxu0 0.0
    %1072 = vmatpush1.msra.mxu0 %v449
    %1073 = vmatprep.subr.mxu0 0.0
    %1074 = vmatpush1.msra.mxu0 %v452
    %1075 = vmatprep.subr.mxu0 0.0
    %1076 = vmatpush1.msra.mxu0 %v455
    %1077 = vmatprep.subr.mxu0 0.0
    %1078 = vmatpush1.msra.mxu0 %v458
    %1079 = vmatprep.subr.mxu0 0.0
    %1080 = vmatpush1.msra.mxu0 %v461
    %1081 = vmatprep.subr.mxu0 0.0
    %1082 = vmatpush1.msra.mxu0 %v464
    %1083 = vmatprep.subr.mxu0 0.0
    %1084 = vmatpush1.msra.mxu0 %v467
    %1085 = vmatprep.subr.mxu0 0.0
    %1086 = vmatpush1.msra.mxu0 %v470
    %1087 = vmatprep.subr.mxu0 0.0
    %1088 = vmatpush1.msra.mxu0 %v473
    %1089 = vmatprep.subr.mxu0 0.0
    %1090 = vmatpush1.msra.mxu0 0.0
    %1091 = vmatprep.subr.mxu0 0.0
    %1092 = vmatpush1.msra.mxu0 0.0
    %1093 = vmatprep.subr.mxu0 0.0
    %1094 = vmatpush1.msra.mxu0 0.0
    %1095 = vmatprep.subr.mxu0 0.0
    %1096 = vmatpush1.msra.mxu0 0.0
    %1097 = vmatprep.subr.mxu0 0.0
    %1098 = vmatpush1.msra.mxu0 0.0
    %1099 = vmatprep.subr.mxu0 0.0
    %1100 = vmatpush1.msra.mxu0 0.0
    %1101 = vmatprep.subr.mxu0 0.0
    %1102 = vmatpush1.msra.mxu0 0.0
    %1103 = vmatprep.subr.mxu0 0.0
    %1104 = vmatpush1.msra.mxu0 0.0
    %1105 = vmatprep.subr.mxu0 0.0
    %1106 = vmatpush1.msra.mxu0 0.0
    %1107 = vmatprep.subr.mxu0 0.0
    %1108 = vmatpush1.msra.mxu0 0.0
    %1109 = vmatprep.subr.mxu0 0.0
    %1110 = vmatpush1.msra.mxu0 0.0
    %1111 = vmatprep.subr.mxu0 0.0
    %1112 = vmatpush1.msra.mxu0 0.0
    %1113 = vmatprep.subr.mxu0 0.0
    %1114 = vmatpush1.msra.mxu0 0.0
    %1115 = vmatprep.subr.mxu0 0.0
    %1116 = vmatpush1.msra.mxu0 0.0
    %1117 = vmatprep.subr.mxu0 0.0
    %1118 = vmatpush1.msra.mxu0 0.0
    %1119 = vmatprep.subr.mxu0 0.0
    %1120 = vmatpush1.msra.mxu0 0.0
    %1121 = vmatprep.mubr.f32.mxu0 0.0
    %1122 = vmatmul.mubr.f32.gmra.mrb[0].mxu0 %v981
    %v1123 = vpop.f32.mrb[0].mxu0
    %v1124 = vadd.f32 0.0, %v1123
    %v1125 = vpop.f32.mrb[0].mxu0
    %1126 = vdwg.mxu0
    %v1127 = vadd.f32 %v983, %v1053
    %v1128 = vxor.u32 %v1127, 2147483648
    %v1129 = vmul.f32 %v1128, 1.442695
    %v1130 = vpow.pop %v1129
    %v1131 = vadd.f32 %v1130, 1.0
    %v1132 = vrcp.pop %v1131
    %v1133 = vmul.f32 1.0, %v1132
    %v1134 = vadd.f32 %v984, %v1055
    %v1135 = vxor.u32 %v1134, 2147483648
    %v1136 = vmul.f32 %v1135, 1.442695
    %v1137 = vpow.pop %v1136
    %v1138 = vadd.f32 %v1137, 1.0
    %v1139 = vrcp.pop %v1138
    %v1140 = vmul.f32 1.0, %v1139
    %v1141 = vadd.f32 %v1124, %v479
    %v1142 = vmul.f32 %v1133, %v1141
    %v1143 = vadd.f32 %v985, %v1142
    %v1144 = vtanh.pop %v1143
    %v1145 = vsub.f32 1.0, %v1140
    %v1146 = vmul.f32 %v1145, %v1144
    %v1147 = vmul.f32 %v1140, %v981
    %v1148 = vadd.f32 %v1146, %v1147
    %s1149 = scalar_lea.vmem [#allocation3], 96
    %v1150 = vld [vmem:[%s1149] sm:$0xff]
    %v1151 = vld [vmem:[%s1149 + $0x8] sm:$0xff]
    %v1152 = vld [vmem:[%s1149 + $0x10] sm:$0xff]
    %1153 = vmatprep.subr.mxu0 %v427
    %1154 = vmatpush1.msra.mxu0 %v426
    %1155 = vmatprep.subr.mxu0 %v430
    %1156 = vmatpush1.msra.mxu0 %v429
    %1157 = vmatprep.subr.mxu0 %v433
    %1158 = vmatpush1.msra.mxu0 %v432
    %1159 = vmatprep.subr.mxu0 %v436
    %1160 = vmatpush1.msra.mxu0 %v435
    %1161 = vmatprep.subr.mxu0 %v439
    %1162 = vmatpush1.msra.mxu0 %v438
    %1163 = vmatprep.subr.mxu0 %v442
    %1164 = vmatpush1.msra.mxu0 %v441
    %1165 = vmatprep.subr.mxu0 %v445
    %1166 = vmatpush1.msra.mxu0 %v444
    %1167 = vmatprep.subr.mxu0 %v448
    %1168 = vmatpush1.msra.mxu0 %v447
    %1169 = vmatprep.subr.mxu0 %v451
    %1170 = vmatpush1.msra.mxu0 %v450
    %1171 = vmatprep.subr.mxu0 %v454
    %1172 = vmatpush1.msra.mxu0 %v453
    %1173 = vmatprep.subr.mxu0 %v457
    %1174 = vmatpush1.msra.mxu0 %v456
    %1175 = vmatprep.subr.mxu0 %v460
    %1176 = vmatpush1.msra.mxu0 %v459
    %1177 = vmatprep.subr.mxu0 %v463
    %1178 = vmatpush1.msra.mxu0 %v462
    %1179 = vmatprep.subr.mxu0 %v466
    %1180 = vmatpush1.msra.mxu0 %v465
    %1181 = vmatprep.subr.mxu0 %v469
    %1182 = vmatpush1.msra.mxu0 %v468
    %1183 = vmatprep.subr.mxu0 %v472
    %1184 = vmatpush1.msra.mxu0 %v471
    %1185 = vmatprep.subr.mxu0 0.0
    %1186 = vmatpush1.msra.mxu0 0.0
    %1187 = vmatprep.subr.mxu0 0.0
    %1188 = vmatpush1.msra.mxu0 0.0
    %1189 = vmatprep.subr.mxu0 0.0
    %1190 = vmatpush1.msra.mxu0 0.0
    %1191 = vmatprep.subr.mxu0 0.0
    %1192 = vmatpush1.msra.mxu0 0.0
    %1193 = vmatprep.subr.mxu0 0.0
    %1194 = vmatpush1.msra.mxu0 0.0
    %1195 = vmatprep.subr.mxu0 0.0
    %1196 = vmatpush1.msra.mxu0 0.0
    %1197 = vmatprep.subr.mxu0 0.0
    %1198 = vmatpush1.msra.mxu0 0.0
    %1199 = vmatprep.subr.mxu0 0.0
    %1200 = vmatpush1.msra.mxu0 0.0
    %1201 = vmatprep.subr.mxu0 0.0
    %1202 = vmatpush1.msra.mxu0 0.0
    %1203 = vmatprep.subr.mxu0 0.0
    %1204 = vmatpush1.msra.mxu0 0.0
    %1205 = vmatprep.subr.mxu0 0.0
    %1206 = vmatpush1.msra.mxu0 0.0
    %1207 = vmatprep.subr.mxu0 0.0
    %1208 = vmatpush1.msra.mxu0 0.0
    %1209 = vmatprep.subr.mxu0 0.0
    %1210 = vmatpush1.msra.mxu0 0.0
    %1211 = vmatprep.subr.mxu0 0.0
    %1212 = vmatpush1.msra.mxu0 0.0
    %1213 = vmatprep.subr.mxu0 0.0
    %1214 = vmatpush1.msra.mxu0 0.0
    %1215 = vmatprep.subr.mxu0 0.0
    %1216 = vmatpush1.msra.mxu0 0.0
    %1217 = vmatprep.mubr.f32.mxu0 0.0
    %1218 = vmatmul.mubr.f32.gmra.mrb[0].mxu0 %v1148
    %v1219 = vpop.f32.mrb[0].mxu0
    %v1220 = vadd.f32 0.0, %v1219
    %v1221 = vpop.f32.mrb[0].mxu0
    %v1222 = vadd.f32 0.0, %v1221
    %1223 = vdwg.mxu0
    %1224 = vmatprep.subr.mxu0 0.0
    %1225 = vmatpush1.msra.mxu0 %v428
    %1226 = vmatprep.subr.mxu0 0.0
    %1227 = vmatpush1.msra.mxu0 %v431
    %1228 = vmatprep.subr.mxu0 0.0
    %1229 = vmatpush1.msra.mxu0 %v434
    %1230 = vmatprep.subr.mxu0 0.0
    %1231 = vmatpush1.msra.mxu0 %v437
    %1232 = vmatprep.subr.mxu0 0.0
    %1233 = vmatpush1.msra.mxu0 %v440
    %1234 = vmatprep.subr.mxu0 0.0
    %1235 = vmatpush1.msra.mxu0 %v443
    %1236 = vmatprep.subr.mxu0 0.0
    %1237 = vmatpush1.msra.mxu0 %v446
    %1238 = vmatprep.subr.mxu0 0.0
    %1239 = vmatpush1.msra.mxu0 %v449
    %1240 = vmatprep.subr.mxu0 0.0
    %1241 = vmatpush1.msra.mxu0 %v452
    %1242 = vmatprep.subr.mxu0 0.0
    %1243 = vmatpush1.msra.mxu0 %v455
    %1244 = vmatprep.subr.mxu0 0.0
    %1245 = vmatpush1.msra.mxu0 %v458
    %1246 = vmatprep.subr.mxu0 0.0
    %1247 = vmatpush1.msra.mxu0 %v461
    %1248 = vmatprep.subr.mxu0 0.0
    %1249 = vmatpush1.msra.mxu0 %v464
    %1250 = vmatprep.subr.mxu0 0.0
    %1251 = vmatpush1.msra.mxu0 %v467
    %1252 = vmatprep.subr.mxu0 0.0
    %1253 = vmatpush1.msra.mxu0 %v470
    %1254 = vmatprep.subr.mxu0 0.0
    %1255 = vmatpush1.msra.mxu0 %v473
    %1256 = vmatprep.subr.mxu0 0.0
    %1257 = vmatpush1.msra.mxu0 0.0
    %1258 = vmatprep.subr.mxu0 0.0
    %1259 = vmatpush1.msra.mxu0 0.0
    %1260 = vmatprep.subr.mxu0 0.0
    %1261 = vmatpush1.msra.mxu0 0.0
    %1262 = vmatprep.subr.mxu0 0.0
    %1263 = vmatpush1.msra.mxu0 0.0
    %1264 = vmatprep.subr.mxu0 0.0
    %1265 = vmatpush1.msra.mxu0 0.0
    %1266 = vmatprep.subr.mxu0 0.0
    %1267 = vmatpush1.msra.mxu0 0.0
    %1268 = vmatprep.subr.mxu0 0.0
    %1269 = vmatpush1.msra.mxu0 0.0
    %1270 = vmatprep.subr.mxu0 0.0
    %1271 = vmatpush1.msra.mxu0 0.0
    %1272 = vmatprep.subr.mxu0 0.0
    %1273 = vmatpush1.msra.mxu0 0.0
    %1274 = vmatprep.subr.mxu0 0.0
    %1275 = vmatpush1.msra.mxu0 0.0
    %1276 = vmatprep.subr.mxu0 0.0
    %1277 = vmatpush1.msra.mxu0 0.0
    %1278 = vmatprep.subr.mxu0 0.0
    %1279 = vmatpush1.msra.mxu0 0.0
    %1280 = vmatprep.subr.mxu0 0.0
    %1281 = vmatpush1.msra.mxu0 0.0
    %1282 = vmatprep.subr.mxu0 0.0
    %1283 = vmatpush1.msra.mxu0 0.0
    %1284 = vmatprep.subr.mxu0 0.0
    %1285 = vmatpush1.msra.mxu0 0.0
    %1286 = vmatprep.subr.mxu0 0.0
    %1287 = vmatpush1.msra.mxu0 0.0
    %1288 = vmatprep.mubr.f32.mxu0 0.0
    %1289 = vmatmul.mubr.f32.gmra.mrb[0].mxu0 %v1148
    %v1290 = vpop.f32.mrb[0].mxu0
    %v1291 = vadd.f32 0.0, %v1290
    %v1292 = vpop.f32.mrb[0].mxu0
    %1293 = vdwg.mxu0
    %v1294 = vadd.f32 %v1150, %v1220
    %v1295 = vxor.u32 %v1294, 2147483648
    %v1296 = vmul.f32 %v1295, 1.442695
    %v1297 = vpow.pop %v1296
    %v1298 = vadd.f32 %v1297, 1.0
    %v1299 = vrcp.pop %v1298
    %v1300 = vmul.f32 1.0, %v1299
    %v1301 = vadd.f32 %v1151, %v1222
    %v1302 = vxor.u32 %v1301, 2147483648
    %v1303 = vmul.f32 %v1302, 1.442695
    %v1304 = vpow.pop %v1303
    %v1305 = vadd.f32 %v1304, 1.0
    %v1306 = vrcp.pop %v1305
    %v1307 = vmul.f32 1.0, %v1306
    %v1308 = vadd.f32 %v1291, %v479
    %v1309 = vmul.f32 %v1300, %v1308
    %v1310 = vadd.f32 %v1152, %v1309
    %v1311 = vtanh.pop %v1310
    %v1312 = vsub.f32 1.0, %v1307
    %v1313 = vmul.f32 %v1312, %v1311
    %v1314 = vmul.f32 %v1307, %v1148
    %v1315 = vadd.f32 %v1313, %v1314
    %s1316 = scalar_lea.vmem [#allocation3], 120
    %v1317 = vld [vmem:[%s1316] sm:$0xff]
    %v1318 = vld [vmem:[%s1316 + $0x8] sm:$0xff]
    %v1319 = vld [vmem:[%s1316 + $0x10] sm:$0xff]
    %1320 = vmatprep.subr.mxu0 %v427
    %1321 = vmatpush1.msra.mxu0 %v426
    %1322 = vmatprep.subr.mxu0 %v430
    %1323 = vmatpush1.msra.mxu0 %v429
    %1324 = vmatprep.subr.mxu0 %v433
    %1325 = vmatpush1.msra.mxu0 %v432
    %1326 = vmatprep.subr.mxu0 %v436
    %1327 = vmatpush1.msra.mxu0 %v435
    %1328 = vmatprep.subr.mxu0 %v439
    %1329 = vmatpush1.msra.mxu0 %v438
    %1330 = vmatprep.subr.mxu0 %v442
    %1331 = vmatpush1.msra.mxu0 %v441
    %1332 = vmatprep.subr.mxu0 %v445
    %1333 = vmatpush1.msra.mxu0 %v444
    %1334 = vmatprep.subr.mxu0 %v448
    %1335 = vmatpush1.msra.mxu0 %v447
    %1336 = vmatprep.subr.mxu0 %v451
    %1337 = vmatpush1.msra.mxu0 %v450
    %1338 = vmatprep.subr.mxu0 %v454
    %1339 = vmatpush1.msra.mxu0 %v453
    %1340 = vmatprep.subr.mxu0 %v457
    %1341 = vmatpush1.msra.mxu0 %v456
    %1342 = vmatprep.subr.mxu0 %v460
    %1343 = vmatpush1.msra.mxu0 %v459
    %1344 = vmatprep.subr.mxu0 %v463
    %1345 = vmatpush1.msra.mxu0 %v462
    %1346 = vmatprep.subr.mxu0 %v466
    %1347 = vmatpush1.msra.mxu0 %v465
    %1348 = vmatprep.subr.mxu0 %v469
    %1349 = vmatpush1.msra.mxu0 %v468
    %1350 = vmatprep.subr.mxu0 %v472
    %1351 = vmatpush1.msra.mxu0 %v471
    %1352 = vmatprep.subr.mxu0 0.0
    %1353 = vmatpush1.msra.mxu0 0.0
    %1354 = vmatprep.subr.mxu0 0.0
    %1355 = vmatpush1.msra.mxu0 0.0
    %1356 = vmatprep.subr.mxu0 0.0
    %1357 = vmatpush1.msra.mxu0 0.0
    %1358 = vmatprep.subr.mxu0 0.0
    %1359 = vmatpush1.msra.mxu0 0.0
    %1360 = vmatprep.subr.mxu0 0.0
    %1361 = vmatpush1.msra.mxu0 0.0
    %1362 = vmatprep.subr.mxu0 0.0
    %1363 = vmatpush1.msra.mxu0 0.0
    %1364 = vmatprep.subr.mxu0 0.0
    %1365 = vmatpush1.msra.mxu0 0.0
    %1366 = vmatprep.subr.mxu0 0.0
    %1367 = vmatpush1.msra.mxu0 0.0
    %1368 = vmatprep.subr.mxu0 0.0
    %1369 = vmatpush1.msra.mxu0 0.0
    %1370 = vmatprep.subr.mxu0 0.0
    %1371 = vmatpush1.msra.mxu0 0.0
    %1372 = vmatprep.subr.mxu0 0.0
    %1373 = vmatpush1.msra.mxu0 0.0
    %1374 = vmatprep.subr.mxu0 0.0
    %1375 = vmatpush1.msra.mxu0 0.0
    %1376 = vmatprep.subr.mxu0 0.0
    %1377 = vmatpush1.msra.mxu0 0.0
    %1378 = vmatprep.subr.mxu0 0.0
    %1379 = vmatpush1.msra.mxu0 0.0
    %1380 = vmatprep.subr.mxu0 0.0
    %1381 = vmatpush1.msra.mxu0 0.0
    %1382 = vmatprep.subr.mxu0 0.0
    %1383 = vmatpush1.msra.mxu0 0.0
    %1384 = vmatprep.mubr.f32.mxu0 0.0
    %1385 = vmatmul.mubr.f32.gmra.mrb[0].mxu0 %v1315
    %v1386 = vpop.f32.mrb[0].mxu0
    %v1387 = vadd.f32 0.0, %v1386
    %v1388 = vpop.f32.mrb[0].mxu0
    %v1389 = vadd.f32 0.0, %v1388
    %1390 = vdwg.mxu0
    %1391 = vmatprep.subr.mxu0 0.0
    %1392 = vmatpush1.msra.mxu0 %v428
    %1393 = vmatprep.subr.mxu0 0.0
    %1394 = vmatpush1.msra.mxu0 %v431
    %1395 = vmatprep.subr.mxu0 0.0
    %1396 = vmatpush1.msra.mxu0 %v434
    %1397 = vmatprep.subr.mxu0 0.0
    %1398 = vmatpush1.msra.mxu0 %v437
    %1399 = vmatprep.subr.mxu0 0.0
    %1400 = vmatpush1.msra.mxu0 %v440
    %1401 = vmatprep.subr.mxu0 0.0
    %1402 = vmatpush1.msra.mxu0 %v443
    %1403 = vmatprep.subr.mxu0 0.0
    %1404 = vmatpush1.msra.mxu0 %v446
    %1405 = vmatprep.subr.mxu0 0.0
    %1406 = vmatpush1.msra.mxu0 %v449
    %1407 = vmatprep.subr.mxu0 0.0
    %1408 = vmatpush1.msra.mxu0 %v452
    %1409 = vmatprep.subr.mxu0 0.0
    %1410 = vmatpush1.msra.mxu0 %v455
    %1411 = vmatprep.subr.mxu0 0.0
    %1412 = vmatpush1.msra.mxu0 %v458
    %1413 = vmatprep.subr.mxu0 0.0
    %1414 = vmatpush1.msra.mxu0 %v461
    %1415 = vmatprep.subr.mxu0 0.0
    %1416 = vmatpush1.msra.mxu0 %v464
    %1417 = vmatprep.subr.mxu0 0.0
    %1418 = vmatpush1.msra.mxu0 %v467
    %1419 = vmatprep.subr.mxu0 0.0
    %1420 = vmatpush1.msra.mxu0 %v470
    %1421 = vmatprep.subr.mxu0 0.0
    %1422 = vmatpush1.msra.mxu0 %v473
    %1423 = vmatprep.subr.mxu0 0.0
    %1424 = vmatpush1.msra.mxu0 0.0
    %1425 = vmatprep.subr.mxu0 0.0
    %1426 = vmatpush1.msra.mxu0 0.0
    %1427 = vmatprep.subr.mxu0 0.0
    %1428 = vmatpush1.msra.mxu0 0.0
    %1429 = vmatprep.subr.mxu0 0.0
    %1430 = vmatpush1.msra.mxu0 0.0
    %1431 = vmatprep.subr.mxu0 0.0
    %1432 = vmatpush1.msra.mxu0 0.0
    %1433 = vmatprep.subr.mxu0 0.0
    %1434 = vmatpush1.msra.mxu0 0.0
    %1435 = vmatprep.subr.mxu0 0.0
    %1436 = vmatpush1.msra.mxu0 0.0
    %1437 = vmatprep.subr.mxu0 0.0
    %1438 = vmatpush1.msra.mxu0 0.0
    %1439 = vmatprep.subr.mxu0 0.0
    %1440 = vmatpush1.msra.mxu0 0.0
    %1441 = vmatprep.subr.mxu0 0.0
    %1442 = vmatpush1.msra.mxu0 0.0
    %1443 = vmatprep.subr.mxu0 0.0
    %1444 = vmatpush1.msra.mxu0 0.0
    %1445 = vmatprep.subr.mxu0 0.0
    %1446 = vmatpush1.msra.mxu0 0.0
    %1447 = vmatprep.subr.mxu0 0.0
    %1448 = vmatpush1.msra.mxu0 0.0
    %1449 = vmatprep.subr.mxu0 0.0
    %1450 = vmatpush1.msra.mxu0 0.0
    %1451 = vmatprep.subr.mxu0 0.0
    %1452 = vmatpush1.msra.mxu0 0.0
    %1453 = vmatprep.subr.mxu0 0.0
    %1454 = vmatpush1.msra.mxu0 0.0
    %1455 = vmatprep.mubr.f32.mxu0 0.0
    %1456 = vmatmul.mubr.f32.gmra.mrb[0].mxu0 %v1315
    %v1457 = vpop.f32.mrb[0].mxu0
    %v1458 = vadd.f32 0.0, %v1457
    %v1459 = vpop.f32.mrb[0].mxu0
    %1460 = vdwg.mxu0
    %v1461 = vadd.f32 %v1317, %v1387
    %v1462 = vxor.u32 %v1461, 2147483648
    %v1463 = vmul.f32 %v1462, 1.442695
    %v1464 = vpow.pop %v1463
    %v1465 = vadd.f32 %v1464, 1.0
    %v1466 = vrcp.pop %v1465
    %v1467 = vmul.f32 1.0, %v1466
    %v1468 = vadd.f32 %v1318, %v1389
    %v1469 = vxor.u32 %v1468, 2147483648
    %v1470 = vmul.f32 %v1469, 1.442695
    %v1471 = vpow.pop %v1470
    %v1472 = vadd.f32 %v1471, 1.0
    %v1473 = vrcp.pop %v1472
    %v1474 = vmul.f32 1.0, %v1473
    %v1475 = vadd.f32 %v1458, %v479
    %v1476 = vmul.f32 %v1467, %v1475
    %v1477 = vadd.f32 %v1319, %v1476
    %v1478 = vtanh.pop %v1477
    %v1479 = vsub.f32 1.0, %v1474
    %v1480 = vmul.f32 %v1479, %v1478
    %v1481 = vmul.f32 %v1474, %v1315
    %v1482 = vadd.f32 %v1480, %v1481
    %s1483 = scalar_lea.vmem [#allocation3], 144
    %v1484 = vld [vmem:[%s1483] sm:$0xff]
    %v1485 = vld [vmem:[%s1483 + $0x8] sm:$0xff]
    %v1486 = vld [vmem:[%s1483 + $0x10] sm:$0xff]
    %1487 = vmatprep.subr.mxu0 %v427
    %1488 = vmatpush1.msra.mxu0 %v426
    %1489 = vmatprep.subr.mxu0 %v430
    %1490 = vmatpush1.msra.mxu0 %v429
    %1491 = vmatprep.subr.mxu0 %v433
    %1492 = vmatpush1.msra.mxu0 %v432
    %1493 = vmatprep.subr.mxu0 %v436
    %1494 = vmatpush1.msra.mxu0 %v435
    %1495 = vmatprep.subr.mxu0 %v439
    %1496 = vmatpush1.msra.mxu0 %v438
    %1497 = vmatprep.subr.mxu0 %v442
    %1498 = vmatpush1.msra.mxu0 %v441
    %1499 = vmatprep.subr.mxu0 %v445
    %1500 = vmatpush1.msra.mxu0 %v444
    %1501 = vmatprep.subr.mxu0 %v448
    %1502 = vmatpush1.msra.mxu0 %v447
    %1503 = vmatprep.subr.mxu0 %v451
    %1504 = vmatpush1.msra.mxu0 %v450
    %1505 = vmatprep.subr.mxu0 %v454
    %1506 = vmatpush1.msra.mxu0 %v453
    %1507 = vmatprep.subr.mxu0 %v457
    %1508 = vmatpush1.msra.mxu0 %v456
    %1509 = vmatprep.subr.mxu0 %v460
    %1510 = vmatpush1.msra.mxu0 %v459
    %1511 = vmatprep.subr.mxu0 %v463
    %1512 = vmatpush1.msra.mxu0 %v462
    %1513 = vmatprep.subr.mxu0 %v466
    %1514 = vmatpush1.msra.mxu0 %v465
    %1515 = vmatprep.subr.mxu0 %v469
    %1516 = vmatpush1.msra.mxu0 %v468
    %1517 = vmatprep.subr.mxu0 %v472
    %1518 = vmatpush1.msra.mxu0 %v471
    %1519 = vmatprep.subr.mxu0 0.0
    %1520 = vmatpush1.msra.mxu0 0.0
    %1521 = vmatprep.subr.mxu0 0.0
    %1522 = vmatpush1.msra.mxu0 0.0
    %1523 = vmatprep.subr.mxu0 0.0
    %1524 = vmatpush1.msra.mxu0 0.0
    %1525 = vmatprep.subr.mxu0 0.0
    %1526 = vmatpush1.msra.mxu0 0.0
    %1527 = vmatprep.subr.mxu0 0.0
    %1528 = vmatpush1.msra.mxu0 0.0
    %1529 = vmatprep.subr.mxu0 0.0
    %1530 = vmatpush1.msra.mxu0 0.0
    %1531 = vmatprep.subr.mxu0 0.0
    %1532 = vmatpush1.msra.mxu0 0.0
    %1533 = vmatprep.subr.mxu0 0.0
    %1534 = vmatpush1.msra.mxu0 0.0
    %1535 = vmatprep.subr.mxu0 0.0
    %1536 = vmatpush1.msra.mxu0 0.0
    %1537 = vmatprep.subr.mxu0 0.0
    %1538 = vmatpush1.msra.mxu0 0.0
    %1539 = vmatprep.subr.mxu0 0.0
    %1540 = vmatpush1.msra.mxu0 0.0
    %1541 = vmatprep.subr.mxu0 0.0
    %1542 = vmatpush1.msra.mxu0 0.0
    %1543 = vmatprep.subr.mxu0 0.0
    %1544 = vmatpush1.msra.mxu0 0.0
    %1545 = vmatprep.subr.mxu0 0.0
    %1546 = vmatpush1.msra.mxu0 0.0
    %1547 = vmatprep.subr.mxu0 0.0
    %1548 = vmatpush1.msra.mxu0 0.0
    %1549 = vmatprep.subr.mxu0 0.0
    %1550 = vmatpush1.msra.mxu0 0.0
    %1551 = vmatprep.mubr.f32.mxu0 0.0
    %1552 = vmatmul.mubr.f32.gmra.mrb[0].mxu0 %v1482
    %v1553 = vpop.f32.mrb[0].mxu0
    %v1554 = vadd.f32 0.0, %v1553
    %v1555 = vpop.f32.mrb[0].mxu0
    %v1556 = vadd.f32 0.0, %v1555
    %1557 = vdwg.mxu0
    %1558 = vmatprep.subr.mxu0 0.0
    %1559 = vmatpush1.msra.mxu0 %v428
    %1560 = vmatprep.subr.mxu0 0.0
    %1561 = vmatpush1.msra.mxu0 %v431
    %1562 = vmatprep.subr.mxu0 0.0
    %1563 = vmatpush1.msra.mxu0 %v434
    %1564 = vmatprep.subr.mxu0 0.0
    %1565 = vmatpush1.msra.mxu0 %v437
    %1566 = vmatprep.subr.mxu0 0.0
    %1567 = vmatpush1.msra.mxu0 %v440
    %1568 = vmatprep.subr.mxu0 0.0
    %1569 = vmatpush1.msra.mxu0 %v443
    %1570 = vmatprep.subr.mxu0 0.0
    %1571 = vmatpush1.msra.mxu0 %v446
    %1572 = vmatprep.subr.mxu0 0.0
    %1573 = vmatpush1.msra.mxu0 %v449
    %1574 = vmatprep.subr.mxu0 0.0
    %1575 = vmatpush1.msra.mxu0 %v452
    %1576 = vmatprep.subr.mxu0 0.0
    %1577 = vmatpush1.msra.mxu0 %v455
    %1578 = vmatprep.subr.mxu0 0.0
    %1579 = vmatpush1.msra.mxu0 %v458
    %1580 = vmatprep.subr.mxu0 0.0
    %1581 = vmatpush1.msra.mxu0 %v461
    %1582 = vmatprep.subr.mxu0 0.0
    %1583 = vmatpush1.msra.mxu0 %v464
    %1584 = vmatprep.subr.mxu0 0.0
    %1585 = vmatpush1.msra.mxu0 %v467
    %1586 = vmatprep.subr.mxu0 0.0
    %1587 = vmatpush1.msra.mxu0 %v470
    %1588 = vmatprep.subr.mxu0 0.0
    %1589 = vmatpush1.msra.mxu0 %v473
    %1590 = vmatprep.subr.mxu0 0.0
    %1591 = vmatpush1.msra.mxu0 0.0
    %1592 = vmatprep.subr.mxu0 0.0
    %1593 = vmatpush1.msra.mxu0 0.0
    %1594 = vmatprep.subr.mxu0 0.0
    %1595 = vmatpush1.msra.mxu0 0.0
    %1596 = vmatprep.subr.mxu0 0.0
    %1597 = vmatpush1.msra.mxu0 0.0
    %1598 = vmatprep.subr.mxu0 0.0
    %1599 = vmatpush1.msra.mxu0 0.0
    %1600 = vmatprep.subr.mxu0 0.0
    %1601 = vmatpush1.msra.mxu0 0.0
    %1602 = vmatprep.subr.mxu0 0.0
    %1603 = vmatpush1.msra.mxu0 0.0
    %1604 = vmatprep.subr.mxu0 0.0
    %1605 = vmatpush1.msra.mxu0 0.0
    %1606 = vmatprep.subr.mxu0 0.0
    %1607 = vmatpush1.msra.mxu0 0.0
    %1608 = vmatprep.subr.mxu0 0.0
    %1609 = vmatpush1.msra.mxu0 0.0
    %1610 = vmatprep.subr.mxu0 0.0
    %1611 = vmatpush1.msra.mxu0 0.0
    %1612 = vmatprep.subr.mxu0 0.0
    %1613 = vmatpush1.msra.mxu0 0.0
    %1614 = vmatprep.subr.mxu0 0.0
    %1615 = vmatpush1.msra.mxu0 0.0
    %1616 = vmatprep.subr.mxu0 0.0
    %1617 = vmatpush1.msra.mxu0 0.0
    %1618 = vmatprep.subr.mxu0 0.0
    %1619 = vmatpush1.msra.mxu0 0.0
    %1620 = vmatprep.subr.mxu0 0.0
    %1621 = vmatpush1.msra.mxu0 0.0
    %1622 = vmatprep.mubr.f32.mxu0 0.0
    %1623 = vmatmul.mubr.f32.gmra.mrb[0].mxu0 %v1482
    %v1624 = vpop.f32.mrb[0].mxu0
    %v1625 = vadd.f32 0.0, %v1624
    %v1626 = vpop.f32.mrb[0].mxu0
    %1627 = vdwg.mxu0
    %v1628 = vadd.f32 %v1484, %v1554
    %v1629 = vxor.u32 %v1628, 2147483648
    %v1630 = vmul.f32 %v1629, 1.442695
    %v1631 = vpow.pop %v1630
    %v1632 = vadd.f32 %v1631, 1.0
    %v1633 = vrcp.pop %v1632
    %v1634 = vmul.f32 1.0, %v1633
    %v1635 = vadd.f32 %v1485, %v1556
    %v1636 = vxor.u32 %v1635, 2147483648
    %v1637 = vmul.f32 %v1636, 1.442695
    %v1638 = vpow.pop %v1637
    %v1639 = vadd.f32 %v1638, 1.0
    %v1640 = vrcp.pop %v1639
    %v1641 = vmul.f32 1.0, %v1640
    %v1642 = vadd.f32 %v1625, %v479
    %v1643 = vmul.f32 %v1634, %v1642
    %v1644 = vadd.f32 %v1486, %v1643
    %v1645 = vtanh.pop %v1644
    %v1646 = vsub.f32 1.0, %v1641
    %v1647 = vmul.f32 %v1646, %v1645
    %v1648 = vmul.f32 %v1641, %v1482
    %v1649 = vadd.f32 %v1647, %v1648
    %s1650 = scalar_lea.vmem [#allocation3], 168
    %v1651 = vld [vmem:[%s1650] sm:$0xff]
    %v1652 = vld [vmem:[%s1650 + $0x8] sm:$0xff]
    %v1653 = vld [vmem:[%s1650 + $0x10] sm:$0xff]
    %1654 = vmatprep.subr.mxu0 %v427
    %1655 = vmatpush1.msra.mxu0 %v426
    %1656 = vmatprep.subr.mxu0 %v430
    %1657 = vmatpush1.msra.mxu0 %v429
    %1658 = vmatprep.subr.mxu0 %v433
    %1659 = vmatpush1.msra.mxu0 %v432
    %1660 = vmatprep.subr.mxu0 %v436
    %1661 = vmatpush1.msra.mxu0 %v435
    %1662 = vmatprep.subr.mxu0 %v439
    %1663 = vmatpush1.msra.mxu0 %v438
    %1664 = vmatprep.subr.mxu0 %v442
    %1665 = vmatpush1.msra.mxu0 %v441
    %1666 = vmatprep.subr.mxu0 %v445
    %1667 = vmatpush1.msra.mxu0 %v444
    %1668 = vmatprep.subr.mxu0 %v448
    %1669 = vmatpush1.msra.mxu0 %v447
    %1670 = vmatprep.subr.mxu0 %v451
    %1671 = vmatpush1.msra.mxu0 %v450
    %1672 = vmatprep.subr.mxu0 %v454
    %1673 = vmatpush1.msra.mxu0 %v453
    %1674 = vmatprep.subr.mxu0 %v457
    %1675 = vmatpush1.msra.mxu0 %v456
    %1676 = vmatprep.subr.mxu0 %v460
    %1677 = vmatpush1.msra.mxu0 %v459
    %1678 = vmatprep.subr.mxu0 %v463
    %1679 = vmatpush1.msra.mxu0 %v462
    %1680 = vmatprep.subr.mxu0 %v466
    %1681 = vmatpush1.msra.mxu0 %v465
    %1682 = vmatprep.subr.mxu0 %v469
    %1683 = vmatpush1.msra.mxu0 %v468
    %1684 = vmatprep.subr.mxu0 %v472
    %1685 = vmatpush1.msra.mxu0 %v471
    %1686 = vmatprep.subr.mxu0 0.0
    %1687 = vmatpush1.msra.mxu0 0.0
    %1688 = vmatprep.subr.mxu0 0.0
    %1689 = vmatpush1.msra.mxu0 0.0
    %1690 = vmatprep.subr.mxu0 0.0
    %1691 = vmatpush1.msra.mxu0 0.0
    %1692 = vmatprep.subr.mxu0 0.0
    %1693 = vmatpush1.msra.mxu0 0.0
    %1694 = vmatprep.subr.mxu0 0.0
    %1695 = vmatpush1.msra.mxu0 0.0
    %1696 = vmatprep.subr.mxu0 0.0
    %1697 = vmatpush1.msra.mxu0 0.0
    %1698 = vmatprep.subr.mxu0 0.0
    %1699 = vmatpush1.msra.mxu0 0.0
    %1700 = vmatprep.subr.mxu0 0.0
    %1701 = vmatpush1.msra.mxu0 0.0
    %1702 = vmatprep.subr.mxu0 0.0
    %1703 = vmatpush1.msra.mxu0 0.0
    %1704 = vmatprep.subr.mxu0 0.0
    %1705 = vmatpush1.msra.mxu0 0.0
    %1706 = vmatprep.subr.mxu0 0.0
    %1707 = vmatpush1.msra.mxu0 0.0
    %1708 = vmatprep.subr.mxu0 0.0
    %1709 = vmatpush1.msra.mxu0 0.0
    %1710 = vmatprep.subr.mxu0 0.0
    %1711 = vmatpush1.msra.mxu0 0.0
    %1712 = vmatprep.subr.mxu0 0.0
    %1713 = vmatpush1.msra.mxu0 0.0
    %1714 = vmatprep.subr.mxu0 0.0
    %1715 = vmatpush1.msra.mxu0 0.0
    %1716 = vmatprep.subr.mxu0 0.0
    %1717 = vmatpush1.msra.mxu0 0.0
    %1718 = vmatprep.mubr.f32.mxu0 0.0
    %1719 = vmatmul.mubr.f32.gmra.mrb[0].mxu0 %v1649
    %v1720 = vpop.f32.mrb[0].mxu0
    %v1721 = vadd.f32 0.0, %v1720
    %v1722 = vpop.f32.mrb[0].mxu0
    %v1723 = vadd.f32 0.0, %v1722
    %1724 = vdwg.mxu0
    %1725 = vmatprep.subr.mxu0 0.0
    %1726 = vmatpush1.msra.mxu0 %v428
    %1727 = vmatprep.subr.mxu0 0.0
    %1728 = vmatpush1.msra.mxu0 %v431
    %1729 = vmatprep.subr.mxu0 0.0
    %1730 = vmatpush1.msra.mxu0 %v434
    %1731 = vmatprep.subr.mxu0 0.0
    %1732 = vmatpush1.msra.mxu0 %v437
    %1733 = vmatprep.subr.mxu0 0.0
    %1734 = vmatpush1.msra.mxu0 %v440
    %1735 = vmatprep.subr.mxu0 0.0
    %1736 = vmatpush1.msra.mxu0 %v443
    %1737 = vmatprep.subr.mxu0 0.0
    %1738 = vmatpush1.msra.mxu0 %v446
    %1739 = vmatprep.subr.mxu0 0.0
    %1740 = vmatpush1.msra.mxu0 %v449
    %1741 = vmatprep.subr.mxu0 0.0
    %1742 = vmatpush1.msra.mxu0 %v452
    %1743 = vmatprep.subr.mxu0 0.0
    %1744 = vmatpush1.msra.mxu0 %v455
    %1745 = vmatprep.subr.mxu0 0.0
    %1746 = vmatpush1.msra.mxu0 %v458
    %1747 = vmatprep.subr.mxu0 0.0
    %1748 = vmatpush1.msra.mxu0 %v461
    %1749 = vmatprep.subr.mxu0 0.0
    %1750 = vmatpush1.msra.mxu0 %v464
    %1751 = vmatprep.subr.mxu0 0.0
    %1752 = vmatpush1.msra.mxu0 %v467
    %1753 = vmatprep.subr.mxu0 0.0
    %1754 = vmatpush1.msra.mxu0 %v470
    %1755 = vmatprep.subr.mxu0 0.0
    %1756 = vmatpush1.msra.mxu0 %v473
    %1757 = vmatprep.subr.mxu0 0.0
    %1758 = vmatpush1.msra.mxu0 0.0
    %1759 = vmatprep.subr.mxu0 0.0
    %1760 = vmatpush1.msra.mxu0 0.0
    %1761 = vmatprep.subr.mxu0 0.0
    %1762 = vmatpush1.msra.mxu0 0.0
    %1763 = vmatprep.subr.mxu0 0.0
    %1764 = vmatpush1.msra.mxu0 0.0
    %1765 = vmatprep.subr.mxu0 0.0
    %1766 = vmatpush1.msra.mxu0 0.0
    %1767 = vmatprep.subr.mxu0 0.0
    %1768 = vmatpush1.msra.mxu0 0.0
    %1769 = vmatprep.subr.mxu0 0.0
    %1770 = vmatpush1.msra.mxu0 0.0
    %1771 = vmatprep.subr.mxu0 0.0
    %1772 = vmatpush1.msra.mxu0 0.0
    %1773 = vmatprep.subr.mxu0 0.0
    %1774 = vmatpush1.msra.mxu0 0.0
    %1775 = vmatprep.subr.mxu0 0.0
    %1776 = vmatpush1.msra.mxu0 0.0
    %1777 = vmatprep.subr.mxu0 0.0
    %1778 = vmatpush1.msra.mxu0 0.0
    %1779 = vmatprep.subr.mxu0 0.0
    %1780 = vmatpush1.msra.mxu0 0.0
    %1781 = vmatprep.subr.mxu0 0.0
    %1782 = vmatpush1.msra.mxu0 0.0
    %1783 = vmatprep.subr.mxu0 0.0
    %1784 = vmatpush1.msra.mxu0 0.0
    %1785 = vmatprep.subr.mxu0 0.0
    %1786 = vmatpush1.msra.mxu0 0.0
    %1787 = vmatprep.subr.mxu0 0.0
    %1788 = vmatpush1.msra.mxu0 0.0
    %1789 = vmatprep.mubr.f32.mxu0 0.0
    %1790 = vmatmul.mubr.f32.gmra.mrb[0].mxu0 %v1649
    %v1791 = vpop.f32.mrb[0].mxu0
    %v1792 = vadd.f32 0.0, %v1791
    %v1793 = vpop.f32.mrb[0].mxu0
    %1794 = vdwg.mxu0
    %v1795 = vadd.f32 %v1651, %v1721
    %v1796 = vxor.u32 %v1795, 2147483648
    %v1797 = vmul.f32 %v1796, 1.442695
    %v1798 = vpow.pop %v1797
    %v1799 = vadd.f32 %v1798, 1.0
    %v1800 = vrcp.pop %v1799
    %v1801 = vmul.f32 1.0, %v1800
    %v1802 = vadd.f32 %v1652, %v1723
    %v1803 = vxor.u32 %v1802, 2147483648
    %v1804 = vmul.f32 %v1803, 1.442695
    %v1805 = vpow.pop %v1804
    %v1806 = vadd.f32 %v1805, 1.0
    %v1807 = vrcp.pop %v1806
    %v1808 = vmul.f32 1.0, %v1807
    %v1809 = vadd.f32 %v1792, %v479
    %v1810 = vmul.f32 %v1801, %v1809
    %v1811 = vadd.f32 %v1653, %v1810
    %v1812 = vtanh.pop %v1811
    %v1813 = vsub.f32 1.0, %v1808
    %v1814 = vmul.f32 %v1813, %v1812
    %v1815 = vmul.f32 %v1808, %v1649
    %v1816 = vadd.f32 %v1814, %v1815
    %1817 = vst [vmem:[#allocation2] sm:$0xff] %v1816
    // Predicated region
    $region50: #{tpu_custom_call.1} parent=1 // pred_check
      %p1818 = pneg %p82
    $region51: #{tpu_custom_call.1} parent=1 // pred_check_branch
      %1820 = sbr.rel (%p1818) target = $region53
    $region52: #{tpu_custom_call.1} parent=1 // pred_region
      %v1821 = vld [vmem:[#allocation10] sm:$0xff]
      %v1822 = vld [vmem:[#allocation10 + $0x8] sm:$0xff]
      %v1823 = vld [vmem:[#allocation10 + $0x10] sm:$0xff]
      %v1824 = vld [vmem:[#allocation10 + $0x18] sm:$0xff]
      %v1825 = vld [vmem:[#allocation10 + $0x20] sm:$0xff]
      %v1826 = vld [vmem:[#allocation10 + $0x28] sm:$0xff]
      %v1827 = vld [vmem:[#allocation10 + $0x30] sm:$0xff]
      %v1828 = vld [vmem:[#allocation10 + $0x38] sm:$0xff]
      %v1829 = vld [vmem:[#allocation10 + $0x40] sm:$0xff]
      %v1830 = vld [vmem:[#allocation10 + $0x48] sm:$0xff]
      %v1831 = vld [vmem:[#allocation10 + $0x50] sm:$0xff]
      %v1832 = vld [vmem:[#allocation10 + $0x58] sm:$0xff]
      %v1833 = vld [vmem:[#allocation10 + $0x60] sm:$0xff]
      %v1834 = vld [vmem:[#allocation10 + $0x68] sm:$0xff]
      %v1835 = vld [vmem:[#allocation10 + $0x70] sm:$0xff]
      %v1836 = vld [vmem:[#allocation10 + $0x78] sm:$0xff]
      %v1837 = vld [vmem:[%s6] sm:$0x1]
      %v1839 = vlaneseq
      %v1840 = vshrl.u32 %v1839, 7
      %v1841 = vsub.s32 0, %v1840
      %v1842 = vrot.slane %v1837, %v1841
      %1844 = vmatprep.subr.mxu0 0.0
      %1845 = vmatpush1.msra.mxu0 %v1821
      %1846 = vmatprep.subr.mxu0 0.0
      %1847 = vmatpush1.msra.mxu0 %v1822
      %1848 = vmatprep.subr.mxu0 0.0
      %1849 = vmatpush1.msra.mxu0 %v1823
      %1850 = vmatprep.subr.mxu0 0.0
      %1851 = vmatpush1.msra.mxu0 %v1824
      %1852 = vmatprep.subr.mxu0 0.0
      %1853 = vmatpush1.msra.mxu0 %v1825
      %1854 = vmatprep.subr.mxu0 0.0
      %1855 = vmatpush1.msra.mxu0 %v1826
      %1856 = vmatprep.subr.mxu0 0.0
      %1857 = vmatpush1.msra.mxu0 %v1827
      %1858 = vmatprep.subr.mxu0 0.0
      %1859 = vmatpush1.msra.mxu0 %v1828
      %1860 = vmatprep.subr.mxu0 0.0
      %1861 = vmatpush1.msra.mxu0 %v1829
      %1862 = vmatprep.subr.mxu0 0.0
      %1863 = vmatpush1.msra.mxu0 %v1830
      %1864 = vmatprep.subr.mxu0 0.0
      %1865 = vmatpush1.msra.mxu0 %v1831
      %1866 = vmatprep.subr.mxu0 0.0
      %1867 = vmatpush1.msra.mxu0 %v1832
      %1868 = vmatprep.subr.mxu0 0.0
      %1869 = vmatpush1.msra.mxu0 %v1833
      %1870 = vmatprep.subr.mxu0 0.0
      %1871 = vmatpush1.msra.mxu0 %v1834
      %1872 = vmatprep.subr.mxu0 0.0
      %1873 = vmatpush1.msra.mxu0 %v1835
      %1874 = vmatprep.subr.mxu0 0.0
      %1875 = vmatpush1.msra.mxu0 %v1836
      %1876 = vmatprep.subr.mxu0 0.0
      %1877 = vmatpush1.msra.mxu0 0.0
      %1878 = vmatprep.subr.mxu0 0.0
      %1879 = vmatpush1.msra.mxu0 0.0
      %1880 = vmatprep.subr.mxu0 0.0
      %1881 = vmatpush1.msra.mxu0 0.0
      %1882 = vmatprep.subr.mxu0 0.0
      %1883 = vmatpush1.msra.mxu0 0.0
      %1884 = vmatprep.subr.mxu0 0.0
      %1885 = vmatpush1.msra.mxu0 0.0
      %1886 = vmatprep.subr.mxu0 0.0
      %1887 = vmatpush1.msra.mxu0 0.0
      %1888 = vmatprep.subr.mxu0 0.0
      %1889 = vmatpush1.msra.mxu0 0.0
      %1890 = vmatprep.subr.mxu0 0.0
      %1891 = vmatpush1.msra.mxu0 0.0
      %1892 = vmatprep.subr.mxu0 0.0
      %1893 = vmatpush1.msra.mxu0 0.0
      %1894 = vmatprep.subr.mxu0 0.0
      %1895 = vmatpush1.msra.mxu0 0.0
      %1896 = vmatprep.subr.mxu0 0.0
      %1897 = vmatpush1.msra.mxu0 0.0
      %1898 = vmatprep.subr.mxu0 0.0
      %1899 = vmatpush1.msra.mxu0 0.0
      %1900 = vmatprep.subr.mxu0 0.0
      %1901 = vmatpush1.msra.mxu0 0.0
      %1902 = vmatprep.subr.mxu0 0.0
      %1903 = vmatpush1.msra.mxu0 0.0
      %1904 = vmatprep.subr.mxu0 0.0
      %1905 = vmatpush1.msra.mxu0 0.0
      %1906 = vmatprep.subr.mxu0 0.0
      %1907 = vmatpush1.msra.mxu0 0.0
      %1908 = vmatprep.mubr.f32.mxu0 0.0
      %1909 = vmatmul.mubr.f32.gmra.mrb[0].mxu0 %v1816
      %v1910 = vpop.f32.mrb[0].mxu0
      %v1911 = vadd.f32 %v1842, %v1910
      %v1912 = vpop.f32.mrb[0].mxu0
      %1913 = vdwg.mxu0
      %1914 = vst [vmem:[#allocation12] sm:$0xff] %v1911
    $region53: #{tpu_custom_call.1} parent=1 // pred_fallthru
      _
    // Predicated region
    $region54: #{tpu_custom_call.1} parent=1 // pred_check
      _
    $region55: #{tpu_custom_call.1} parent=1 // pred_check_branch
      %1916 = sbr.rel (0) target = $region57
    $region56: #{tpu_custom_call.1} parent=1 // pred_region
      %s1918 = ssub.s32 128, 128
      %1919 = vsyncadd [#allocation6], %s1918
      %s1921 = sshll.u32 [#allocation12], 4
      %s1922 = int_to_ptr.vmem [resolvable:$true] %s1921
      %1924 = dma.vmem_to_hbm [thread:$0]  %s1922, 128, %s7, [#allocation6]
    $region57: #{tpu_custom_call.1} parent=1 // pred_fallthru
      _
    // Predicated region
    $region58: #{tpu_custom_call.1} parent=1 // pred_check
      _
    $region59: #{tpu_custom_call.1} parent=1 // pred_check_branch
      %1926 = sbr.rel (0) target = $region61
    $region60: #{tpu_custom_call.1} parent=1 // pred_region
      %1927 = dma.done [#allocation6], 128
    $region61: #{tpu_custom_call.1} parent=1 // pred_fallthru
      _
    %1928 = vsyncpa [#allocation5], 1
    %1929 = vsyncpa [#allocation8], 1
    %1930 = vsyncpa [#allocation11], 1
    %1931 = vsyncpa [#allocation6], 1

</llo_original>
